<compile_context>
chip_gen: v7x
topology: tpu7x:2x2x1
jax: 0.10.0
libtpu: 0.0.40
codegen_flags: <defaults>
</compile_context>

<pallas_src>
import functools

import jax
import jax.numpy as jnp
from jax import lax
from jax.experimental import pallas as pl
from jax.experimental.pallas import tpu as pltpu


def _layernorm(x, g, b, eps=1e-5):
    mu = jnp.mean(x, axis=-1, keepdims=True)
    var = jnp.mean((x - mu) ** 2, axis=-1, keepdims=True)
    return (x - mu) * lax.rsqrt(var + eps) * g + b


def cross_attention_kernel(deep_ref, xfc_ref,
                           wq_ref, bq_ref, wkv_ref, bv_ref,
                           m_ref, mt_ref,
                           g1_ref, be1_ref, w1_ref, b1_ref, w2_ref, b2_ref,
                           g2_ref, be2_ref, out_ref, *, heads, head_dim, block_b):
    # deep_ref: (Bt, C, HW) channels-first, xfc_ref: (Bt, Fin), out_ref: (Bt, E)
    embed_dim = heads * head_dim
    hw = deep_ref.shape[2]
    inv_scale = 1.0 / (head_dim ** 0.5)

    # q projection for the whole batch block; 1/sqrt(head_dim) folded into q
    # (q only feeds the scores).
    q = (jnp.dot(xfc_ref[...], wq_ref[...], preferred_element_type=jnp.float32)
         + bq_ref[...]) * inv_scale                                   # (Bt, E)

    M = m_ref[...]         # (E, heads)  M[e, h] = 1 iff channel e is in head h
    MT = mt_ref[...]       # (heads, E)
    wkv_t = wkv_ref[...]   # (2E, C)     fused K/V 1x1-conv weight, transposed
    ones_row = jnp.ones((1, hw), jnp.float32)

    # dot_general dims: contract the lane (HW) axis of BOTH operands -> rows.
    dn_lane = (((1,), (1,)), ((), ()))

    num_rows = []
    den_rows = []
    for b in range(block_b):                      # static, unrolled (Bt small)
        d_b = deep_ref[b]                                             # (C, HW)
        # fused K/V projection (== 1x1 conv), transposed layout
        kv_t = jnp.dot(wkv_t, d_b, preferred_element_type=jnp.float32)  # (2E, HW)
        k_t = kv_t[:embed_dim]                                        # (E, HW)
        v_t = kv_t[embed_dim:]                                        # (E, HW)

        # scores[h, s] = sum_e 1[e in head h] * q[b, e] * k_t[e, s]
        scores = jnp.dot(MT * q[b:b + 1], k_t,
                         preferred_element_type=jnp.float32)          # (heads, HW)
        scores = scores - jnp.max(scores, axis=1, keepdims=True)
        ew = jnp.exp(scores)                                          # (heads, HW)

        # expand per-head weights to per-channel: ew_exp[e, s] = ew[head(e), s]
        ew_exp = jnp.dot(M, ew, preferred_element_type=jnp.float32)   # (E, HW)

        # un-normalized numerator / denominator as (1, E) rows via MXU dots
        num_rows.append(lax.dot_general(ones_row, v_t * ew_exp, dn_lane,
                                        preferred_element_type=jnp.float32))
        den_rows.append(lax.dot_general(ones_row, ew_exp, dn_lane,
                                        preferred_element_type=jnp.float32))

    num = jnp.concatenate(num_rows, axis=0)                           # (Bt, E)
    den = jnp.concatenate(den_rows, axis=0)                           # (Bt, E)
    # deferred softmax normalization; V-bias added after (weights sum to 1)
    attn = num * pl.reciprocal(den) + bv_ref[...]                     # (Bt, E)

    # LayerNorm -> FF (Linear, ReLU, Linear) -> residual -> LayerNorm
    x1 = _layernorm(attn, g1_ref[...], be1_ref[...])
    h1 = jnp.maximum(
        jnp.dot(x1, w1_ref[...], preferred_element_type=jnp.float32) + b1_ref[...],
        0.0)
    ff = jnp.dot(h1, w2_ref[...], preferred_element_type=jnp.float32) + b2_ref[...]
    x2 = _layernorm(x1 + ff, g2_ref[...], be2_ref[...])
    out_ref[...] = x2.astype(out_ref.dtype)


def cross_attention_bc(deep, x_fc, params, heads, *, block_b=None):
    """deep: (B, C, H, W) NCHW; x_fc: (B, Fin). Returns (B, E, H, W) NCHW."""
    B, C, H, W = deep.shape
    Fin = x_fc.shape[1]
    E = params["wq"].shape[1]
    head_dim = E // heads
    HW = H * W

    # free reshape only (no transpose of the big tensor)
    deep_r = deep.reshape(B, C, HW)

    if block_b is None:
        block_b = min(B, 8)
    grid_b = -(-B // block_b)
    B_pad = grid_b * block_b
    if B_pad != B:
        deep_r = jnp.pad(deep_r, ((0, B_pad - B), (0, 0), (0, 0)))
        x_fc = jnp.pad(x_fc, ((0, B_pad - B), (0, 0)))

    # fused K/V projection weight, transposed for the channels-first layout
    wkv_t = jnp.concatenate([params["wk"], params["wv"]], axis=1).T      # (2E, C)
    # head-membership indicator matrices (compile-time constants, hoisted)
    head_of = jnp.arange(E, dtype=jnp.int32) // head_dim
    M = (head_of[:, None] ==
         jnp.arange(heads, dtype=jnp.int32)[None, :]).astype(jnp.float32)  # (E, heads)
    MT = M.T                                                               # (heads, E)

    plist = [params["wq"], params["bq"], wkv_t, params["bv"], M, MT,
             params["g1"], params["be1"], params["w1"], params["b1"],
             params["w2"], params["b2"], params["g2"], params["be2"]]

    in_specs = [
        pl.BlockSpec((block_b, C, HW), lambda b: (b, 0, 0)),
        pl.BlockSpec((block_b, Fin), lambda b: (b, 0)),
    ] + [pl.BlockSpec(p.shape, lambda b: (0, 0)) for p in plist]

    kernel = functools.partial(cross_attention_kernel, heads=heads,
                               head_dim=head_dim, block_b=block_b)
    x2 = pl.pallas_call(
        kernel,
        out_shape=jax.ShapeDtypeStruct((B_pad, E), jnp.float32),
        grid=(grid_b,),
        in_specs=in_specs,
        out_specs=pl.BlockSpec((block_b, E), lambda b: (b, 0)),
        compiler_params=pltpu.CompilerParams(dimension_semantics=("parallel",)),
    )(deep_r, x_fc, *plist)

    x2 = x2[:B]
    # PyTorch: x2.view(B, E, 1, 1).expand(-1, -1, H, W)  (pure broadcast)
    return jnp.broadcast_to(x2[:, :, None, None], (B, E, H, W))


def init_params(key, fc_in, deep_c, embed_dim):
    """Deterministic synthetic parameters (Linear weights stored as (in, out))."""
    keys = jax.random.split(key, 10)

    def w(k, shape, scale=0.05):
        return scale * jax.random.normal(k, shape, dtype=jnp.float32)

    return {
        "wq": w(keys[0], (fc_in, embed_dim)),
        "bq": w(keys[1], (1, embed_dim)),
        "wk": w(keys[2], (deep_c, embed_dim)),
        "bk": w(keys[3], (1, embed_dim)),
        "wv": w(keys[4], (deep_c, embed_dim)),
        "bv": w(keys[5], (1, embed_dim)),
        "g1": jnp.ones((1, embed_dim), jnp.float32),
        "be1": jnp.zeros((1, embed_dim), jnp.float32),
        "w1": w(keys[6], (embed_dim, 4 * embed_dim)),
        "b1": w(keys[7], (1, 4 * embed_dim)),
        "w2": w(keys[8], (4 * embed_dim, embed_dim)),
        "b2": w(keys[9], (1, embed_dim)),
        "g2": jnp.ones((1, embed_dim), jnp.float32),
        "be2": jnp.zeros((1, embed_dim), jnp.float32),
    }


def reference_forward(deep, x_fc, p, heads):
    """Pure-JAX replica of the PyTorch forward, for validation."""
    B, C, H, W = deep.shape
    E = p["wq"].shape[1]
    hd = E // heads
    q = x_fc @ p["wq"] + p["bq"][0]
    dflat = deep.reshape(B, C, H * W)
    k = jnp.einsum("ce,bcs->bes", p["wk"], dflat) + p["bk"][0][None, :, None]
    v = jnp.einsum("ce,bcs->bes", p["wv"], dflat) + p["bv"][0][None, :, None]
    q = q.reshape(B, heads, hd)[:, :, None, :]                     # (B,h,1,hd)
    k = k.reshape(B, heads, hd, -1).transpose(0, 1, 3, 2)          # (B,h,HW,hd)
    v = v.reshape(B, heads, hd, -1).transpose(0, 1, 3, 2)          # (B,h,HW,hd)
    scores = jnp.matmul(q, k.transpose(0, 1, 3, 2)) / (hd ** 0.5)  # (B,h,1,HW)
    wts = jax.nn.softmax(scores, axis=-1)
    attn = jnp.matmul(wts, v)[:, :, 0, :].reshape(B, E)

    def ln(x, g, b):
        mu = x.mean(-1, keepdims=True)
        var = ((x - mu) ** 2).mean(-1, keepdims=True)
        return (x - mu) / jnp.sqrt(var + 1e-5) * g[0] + b[0]

    x1 = ln(attn, p["g1"], p["be1"])
    ff = jnp.maximum(x1 @ p["w1"] + p["b1"][0], 0.0) @ p["w2"] + p["b2"][0]
    x2 = ln(x1 + ff, p["g2"], p["be2"])
    return jnp.broadcast_to(x2[:, :, None, None], (B, E, H, W))


if __name__ == "__main__":
    B, C_deep, H, W = 2, 4, 16, 16
    fc_in, embed_dim, heads = 16, 32, 4

    key = jax.random.PRNGKey(0)
    k_deep, k_fc, k_par = jax.random.split(key, 3)
    deep = jax.random.normal(k_deep, (B, C_deep, H, W), dtype=jnp.float32)
    x_fc = jax.random.normal(k_fc, (B, fc_in), dtype=jnp.float32)
    params = init_params(k_par, fc_in, C_deep, embed_dim)

    out = cross_attention_bc(deep, x_fc, params, heads)
    out = jax.block_until_ready(out)

    ref = reference_forward(deep, x_fc, params, heads)
    assert out.shape == (B, embed_dim, H, W), out.shape
    assert jnp.allclose(out, ref, atol=1e-4, rtol=1e-4), "mismatch vs reference"

    print("KERNEL_OK")
</pallas_src>

<mosaic_0001>
module attributes {stable_mosaic.version = 11 : i64} {
  func.func @cross_attention_kernel(%arg0: i32, %arg1: memref<2x4x256xf32, #tpu.memory_space<vmem>>, %arg2: memref<2x16xf32, #tpu.memory_space<vmem>>, %arg3: memref<16x32xf32, #tpu.memory_space<vmem>>, %arg4: memref<1x32xf32, #tpu.memory_space<vmem>>, %arg5: memref<64x4xf32, #tpu.memory_space<vmem>>, %arg6: memref<1x32xf32, #tpu.memory_space<vmem>>, %arg7: memref<32x4xf32, #tpu.memory_space<vmem>>, %arg8: memref<4x32xf32, #tpu.memory_space<vmem>>, %arg9: memref<1x32xf32, #tpu.memory_space<vmem>>, %arg10: memref<1x32xf32, #tpu.memory_space<vmem>>, %arg11: memref<32x128xf32, #tpu.memory_space<vmem>>, %arg12: memref<1x128xf32, #tpu.memory_space<vmem>>, %arg13: memref<128x32xf32, #tpu.memory_space<vmem>>, %arg14: memref<1x32xf32, #tpu.memory_space<vmem>>, %arg15: memref<1x32xf32, #tpu.memory_space<vmem>>, %arg16: memref<1x32xf32, #tpu.memory_space<vmem>>, %arg17: memref<2x32xf32, #tpu.memory_space<vmem>>) attributes {dimension_semantics = [#tpu.dimension_semantics<parallel>], iteration_bounds = array<i64: 1>, scalar_prefetch = 0 : i64, scratch_operands = 0 : i64, tpu.core_type = #tpu.core_type<tc>, window_params = [{transform_indices = @transform_0, window_bounds = array<i64: 2, 4, 256>}, {transform_indices = @transform_1, window_bounds = array<i64: 2, 16>}, {pipeline_mode = #tpu.pipeline_mode<synchronous>, transform_indices = @transform_2, window_bounds = array<i64: 16, 32>}, {pipeline_mode = #tpu.pipeline_mode<synchronous>, transform_indices = @transform_3, window_bounds = array<i64: 1, 32>}, {pipeline_mode = #tpu.pipeline_mode<synchronous>, transform_indices = @transform_4, window_bounds = array<i64: 64, 4>}, {pipeline_mode = #tpu.pipeline_mode<synchronous>, transform_indices = @transform_5, window_bounds = array<i64: 1, 32>}, {pipeline_mode = #tpu.pipeline_mode<synchronous>, transform_indices = @transform_6, window_bounds = array<i64: 32, 4>}, {pipeline_mode = #tpu.pipeline_mode<synchronous>, transform_indices = @transform_7, window_bounds = array<i64: 4, 32>}, {pipeline_mode = #tpu.pipeline_mode<synchronous>, transform_indices = @transform_8, window_bounds = array<i64: 1, 32>}, {pipeline_mode = #tpu.pipeline_mode<synchronous>, transform_indices = @transform_9, window_bounds = array<i64: 1, 32>}, {pipeline_mode = #tpu.pipeline_mode<synchronous>, transform_indices = @transform_10, window_bounds = array<i64: 32, 128>}, {pipeline_mode = #tpu.pipeline_mode<synchronous>, transform_indices = @transform_11, window_bounds = array<i64: 1, 128>}, {pipeline_mode = #tpu.pipeline_mode<synchronous>, transform_indices = @transform_12, window_bounds = array<i64: 128, 32>}, {pipeline_mode = #tpu.pipeline_mode<synchronous>, transform_indices = @transform_13, window_bounds = array<i64: 1, 32>}, {pipeline_mode = #tpu.pipeline_mode<synchronous>, transform_indices = @transform_14, window_bounds = array<i64: 1, 32>}, {pipeline_mode = #tpu.pipeline_mode<synchronous>, transform_indices = @transform_15, window_bounds = array<i64: 1, 32>}, {transform_indices = @transform_16, window_bounds = array<i64: 2, 32>}]} {
    %c0 = arith.constant 0 : index
    %c0_0 = arith.constant 0 : index
    %0 = vector.load %arg2[%c0, %c0_0] : memref<2x16xf32, #tpu.memory_space<vmem>>, vector<2x16xf32>
    %c0_1 = arith.constant 0 : index
    %c0_2 = arith.constant 0 : index
    %1 = vector.load %arg3[%c0_1, %c0_2] : memref<16x32xf32, #tpu.memory_space<vmem>>, vector<16x32xf32>
    %cst = arith.constant dense<0.000000e+00> : vector<2x32xf32>
    %2 = tpu.matmul %0, %1, %cst {dimension_numbers = #tpu.dot_dimension_numbers<[1], [0], [0], [1], [0, 0, 1, 1], [], []>} : vector<2x16xf32>, vector<16x32xf32>, vector<2x32xf32> -> vector<2x32xf32>
    %c0_3 = arith.constant 0 : index
    %c0_4 = arith.constant 0 : index
    %3 = vector.load %arg4[%c0_3, %c0_4] : memref<1x32xf32, #tpu.memory_space<vmem>>, vector<1x32xf32>
    %4 = vector.broadcast %3 : vector<1x32xf32> to vector<2x32xf32>
    %5 = arith.addf %2, %4 : vector<2x32xf32>
    %cst_5 = arith.constant 0.353553385 : f32
    %6 = vector.broadcast %cst_5 : f32 to vector<2x32xf32>
    %7 = arith.mulf %5, %6 : vector<2x32xf32>
    %c0_6 = arith.constant 0 : index
    %c0_7 = arith.constant 0 : index
    %8 = vector.load %arg7[%c0_6, %c0_7] : memref<32x4xf32, #tpu.memory_space<vmem>>, vector<32x4xf32>
    %c0_8 = arith.constant 0 : index
    %c0_9 = arith.constant 0 : index
    %9 = vector.load %arg8[%c0_8, %c0_9] : memref<4x32xf32, #tpu.memory_space<vmem>>, vector<4x32xf32>
    %c0_10 = arith.constant 0 : index
    %c0_11 = arith.constant 0 : index
    %10 = vector.load %arg5[%c0_10, %c0_11] : memref<64x4xf32, #tpu.memory_space<vmem>>, vector<64x4xf32>
    %cst_12 = arith.constant 1.000000e+00 : f32
    %11 = vector.broadcast %cst_12 : f32 to vector<1x256xf32>
    %c0_13 = arith.constant 0 : index
    %c0_14 = arith.constant 0 : index
    %c0_15 = arith.constant 0 : index
    %12 = vector.load %arg1[%c0_13, %c0_14, %c0_15] : memref<2x4x256xf32, #tpu.memory_space<vmem>>, vector<1x4x256xf32>
    %13 = vector.shape_cast %12 : vector<1x4x256xf32> to vector<4x256xf32>
    %cst_16 = arith.constant dense<0.000000e+00> : vector<64x256xf32>
    %14 = tpu.matmul %10, %13, %cst_16 {dimension_numbers = #tpu.dot_dimension_numbers<[1], [0], [0], [1], [0, 0, 1, 1], [], []>} : vector<64x4xf32>, vector<4x256xf32>, vector<64x256xf32> -> vector<64x256xf32>
    %15 = vector.extract_strided_slice %14 {offsets = [0, 0], sizes = [32, 256], strides = [1, 1]} : vector<64x256xf32> to vector<32x256xf32>
    %16 = vector.extract_strided_slice %14 {offsets = [32, 0], sizes = [32, 256], strides = [1, 1]} : vector<64x256xf32> to vector<32x256xf32>
    %17 = vector.extract_strided_slice %7 {offsets = [0, 0], sizes = [1, 32], strides = [1, 1]} : vector<2x32xf32> to vector<1x32xf32>
    %18 = vector.broadcast %17 : vector<1x32xf32> to vector<4x32xf32>
    %19 = arith.mulf %9, %18 : vector<4x32xf32>
    %cst_17 = arith.constant dense<0.000000e+00> : vector<4x256xf32>
    %20 = tpu.matmul %19, %15, %cst_17 {dimension_numbers = #tpu.dot_dimension_numbers<[1], [0], [0], [1], [0, 0, 1, 1], [], []>} : vector<4x32xf32>, vector<32x256xf32>, vector<4x256xf32> -> vector<4x256xf32>
    %cst_18 = arith.constant dense<0xFF800000> : vector<4xf32>
    %21 = vector.multi_reduction <maximumf>, %20, %cst_18 [1] : vector<4x256xf32> to vector<4xf32>
    %22 = vector.shape_cast %21 : vector<4xf32> to vector<4x1xf32>
    %23 = vector.broadcast %22 : vector<4x1xf32> to vector<4x256xf32>
    %24 = arith.subf %20, %23 : vector<4x256xf32>
    %25 = math.exp %24 : vector<4x256xf32>
    %cst_19 = arith.constant dense<0.000000e+00> : vector<32x256xf32>
    %26 = tpu.matmul %8, %25, %cst_19 {dimension_numbers = #tpu.dot_dimension_numbers<[1], [0], [0], [1], [0, 0, 1, 1], [], []>} : vector<32x4xf32>, vector<4x256xf32>, vector<32x256xf32> -> vector<32x256xf32>
    %27 = arith.mulf %16, %26 : vector<32x256xf32>
    %cst_20 = arith.constant dense<0.000000e+00> : vector<1x32xf32>
    %28 = tpu.matmul %11, %27, %cst_20 {dimension_numbers = #tpu.dot_dimension_numbers<[1], [1], [0], [0], [0, 0, 1, 0], [], []>} : vector<1x256xf32>, vector<32x256xf32>, vector<1x32xf32> -> vector<1x32xf32>
    %cst_21 = arith.constant dense<0.000000e+00> : vector<1x32xf32>
    %29 = tpu.matmul %11, %26, %cst_21 {dimension_numbers = #tpu.dot_dimension_numbers<[1], [1], [0], [0], [0, 0, 1, 0], [], []>} : vector<1x256xf32>, vector<32x256xf32>, vector<1x32xf32> -> vector<1x32xf32>
    %c1 = arith.constant 1 : index
    %c0_22 = arith.constant 0 : index
    %c0_23 = arith.constant 0 : index
    %30 = vector.load %arg1[%c1, %c0_22, %c0_23] : memref<2x4x256xf32, #tpu.memory_space<vmem>>, vector<1x4x256xf32>
    %31 = vector.shape_cast %30 : vector<1x4x256xf32> to vector<4x256xf32>
    %cst_24 = arith.constant dense<0.000000e+00> : vector<64x256xf32>
    %32 = tpu.matmul %10, %31, %cst_24 {dimension_numbers = #tpu.dot_dimension_numbers<[1], [0], [0], [1], [0, 0, 1, 1], [], []>} : vector<64x4xf32>, vector<4x256xf32>, vector<64x256xf32> -> vector<64x256xf32>
    %33 = vector.extract_strided_slice %32 {offsets = [0, 0], sizes = [32, 256], strides = [1, 1]} : vector<64x256xf32> to vector<32x256xf32>
    %34 = vector.extract_strided_slice %32 {offsets = [32, 0], sizes = [32, 256], strides = [1, 1]} : vector<64x256xf32> to vector<32x256xf32>
    %35 = vector.extract_strided_slice %7 {offsets = [1, 0], sizes = [1, 32], strides = [1, 1]} : vector<2x32xf32> to vector<1x32xf32>
    %36 = vector.broadcast %35 : vector<1x32xf32> to vector<4x32xf32>
    %37 = arith.mulf %9, %36 : vector<4x32xf32>
    %cst_25 = arith.constant dense<0.000000e+00> : vector<4x256xf32>
    %38 = tpu.matmul %37, %33, %cst_25 {dimension_numbers = #tpu.dot_dimension_numbers<[1], [0], [0], [1], [0, 0, 1, 1], [], []>} : vector<4x32xf32>, vector<32x256xf32>, vector<4x256xf32> -> vector<4x256xf32>
    %cst_26 = arith.constant dense<0xFF800000> : vector<4xf32>
    %39 = vector.multi_reduction <maximumf>, %38, %cst_26 [1] : vector<4x256xf32> to vector<4xf32>
    %40 = vector.shape_cast %39 : vector<4xf32> to vector<4x1xf32>
    %41 = vector.broadcast %40 : vector<4x1xf32> to vector<4x256xf32>
    %42 = arith.subf %38, %41 : vector<4x256xf32>
    %43 = math.exp %42 : vector<4x256xf32>
    %cst_27 = arith.constant dense<0.000000e+00> : vector<32x256xf32>
    %44 = tpu.matmul %8, %43, %cst_27 {dimension_numbers = #tpu.dot_dimension_numbers<[1], [0], [0], [1], [0, 0, 1, 1], [], []>} : vector<32x4xf32>, vector<4x256xf32>, vector<32x256xf32> -> vector<32x256xf32>
    %45 = arith.mulf %34, %44 : vector<32x256xf32>
    %cst_28 = arith.constant dense<0.000000e+00> : vector<1x32xf32>
    %46 = tpu.matmul %11, %45, %cst_28 {dimension_numbers = #tpu.dot_dimension_numbers<[1], [1], [0], [0], [0, 0, 1, 0], [], []>} : vector<1x256xf32>, vector<32x256xf32>, vector<1x32xf32> -> vector<1x32xf32>
    %cst_29 = arith.constant dense<0.000000e+00> : vector<1x32xf32>
    %47 = tpu.matmul %11, %44, %cst_29 {dimension_numbers = #tpu.dot_dimension_numbers<[1], [1], [0], [0], [0, 0, 1, 0], [], []>} : vector<1x256xf32>, vector<32x256xf32>, vector<1x32xf32> -> vector<1x32xf32>
    %48 = tpu.concatenate %28, %46 in 0 : vector<1x32xf32>, vector<1x32xf32> -> vector<2x32xf32>
    %49 = tpu.concatenate %29, %47 in 0 : vector<1x32xf32>, vector<1x32xf32> -> vector<2x32xf32>
    %50 = tpu.reciprocal %49 : vector<2x32xf32> -> vector<2x32xf32>
    %51 = arith.mulf %48, %50 : vector<2x32xf32>
    %c0_30 = arith.constant 0 : index
    %c0_31 = arith.constant 0 : index
    %52 = vector.load %arg6[%c0_30, %c0_31] : memref<1x32xf32, #tpu.memory_space<vmem>>, vector<1x32xf32>
    %53 = vector.broadcast %52 : vector<1x32xf32> to vector<2x32xf32>
    %54 = arith.addf %51, %53 : vector<2x32xf32>
    %c0_32 = arith.constant 0 : index
    %c0_33 = arith.constant 0 : index
    %55 = vector.load %arg9[%c0_32, %c0_33] : memref<1x32xf32, #tpu.memory_space<vmem>>, vector<1x32xf32>
    %c0_34 = arith.constant 0 : index
    %c0_35 = arith.constant 0 : index
    %56 = vector.load %arg10[%c0_34, %c0_35] : memref<1x32xf32, #tpu.memory_space<vmem>>, vector<1x32xf32>
    %cst_36 = arith.constant dense<0.000000e+00> : vector<2xf32>
    %57 = vector.multi_reduction <add>, %54, %cst_36 [1] : vector<2x32xf32> to vector<2xf32>
    %58 = vector.shape_cast %57 : vector<2xf32> to vector<2x1xf32>
    %cst_37 = arith.constant 3.200000e+01 : f32
    %59 = vector.broadcast %cst_37 : f32 to vector<2x1xf32>
    %60 = arith.divf %58, %59 : vector<2x1xf32>
    %61 = vector.broadcast %60 : vector<2x1xf32> to vector<2x32xf32>
    %62 = arith.subf %54, %61 : vector<2x32xf32>
    %63 = arith.mulf %62, %62 : vector<2x32xf32>
    %cst_38 = arith.constant dense<0.000000e+00> : vector<2xf32>
    %64 = vector.multi_reduction <add>, %63, %cst_38 [1] : vector<2x32xf32> to vector<2xf32>
    %65 = vector.shape_cast %64 : vector<2xf32> to vector<2x1xf32>
    %cst_39 = arith.constant 3.200000e+01 : f32
    %66 = vector.broadcast %cst_39 : f32 to vector<2x1xf32>
    %67 = arith.divf %65, %66 : vector<2x1xf32>
    %68 = vector.broadcast %60 : vector<2x1xf32> to vector<2x32xf32>
    %69 = arith.subf %54, %68 : vector<2x32xf32>
    %cst_40 = arith.constant 9.99999974E-6 : f32
    %70 = vector.broadcast %cst_40 : f32 to vector<2x1xf32>
    %71 = arith.addf %67, %70 : vector<2x1xf32>
    %72 = math.rsqrt %71 : vector<2x1xf32>
    %73 = vector.broadcast %72 : vector<2x1xf32> to vector<2x32xf32>
    %74 = arith.mulf %69, %73 : vector<2x32xf32>
    %75 = vector.broadcast %55 : vector<1x32xf32> to vector<2x32xf32>
    %76 = arith.mulf %74, %75 : vector<2x32xf32>
    %77 = vector.broadcast %56 : vector<1x32xf32> to vector<2x32xf32>
    %78 = arith.addf %76, %77 : vector<2x32xf32>
    %c0_41 = arith.constant 0 : index
    %c0_42 = arith.constant 0 : index
    %79 = vector.load %arg11[%c0_41, %c0_42] : memref<32x128xf32, #tpu.memory_space<vmem>>, vector<32x128xf32>
    %cst_43 = arith.constant dense<0.000000e+00> : vector<2x128xf32>
    %80 = tpu.matmul %78, %79, %cst_43 {dimension_numbers = #tpu.dot_dimension_numbers<[1], [0], [0], [1], [0, 0, 1, 1], [], []>} : vector<2x32xf32>, vector<32x128xf32>, vector<2x128xf32> -> vector<2x128xf32>
    %c0_44 = arith.constant 0 : index
    %c0_45 = arith.constant 0 : index
    %81 = vector.load %arg12[%c0_44, %c0_45] : memref<1x128xf32, #tpu.memory_space<vmem>>, vector<1x128xf32>
    %82 = vector.broadcast %81 : vector<1x128xf32> to vector<2x128xf32>
    %83 = arith.addf %80, %82 : vector<2x128xf32>
    %cst_46 = arith.constant 0.000000e+00 : f32
    %84 = vector.broadcast %cst_46 : f32 to vector<2x128xf32>
    %85 = arith.maximumf %83, %84 : vector<2x128xf32>
    %c0_47 = arith.constant 0 : index
    %c0_48 = arith.constant 0 : index
    %86 = vector.load %arg13[%c0_47, %c0_48] : memref<128x32xf32, #tpu.memory_space<vmem>>, vector<128x32xf32>
    %cst_49 = arith.constant dense<0.000000e+00> : vector<2x32xf32>
    %87 = tpu.matmul %85, %86, %cst_49 {dimension_numbers = #tpu.dot_dimension_numbers<[1], [0], [0], [1], [0, 0, 1, 1], [], []>} : vector<2x128xf32>, vector<128x32xf32>, vector<2x32xf32> -> vector<2x32xf32>
    %c0_50 = arith.constant 0 : index
    %c0_51 = arith.constant 0 : index
    %88 = vector.load %arg14[%c0_50, %c0_51] : memref<1x32xf32, #tpu.memory_space<vmem>>, vector<1x32xf32>
    %89 = vector.broadcast %88 : vector<1x32xf32> to vector<2x32xf32>
    %90 = arith.addf %87, %89 : vector<2x32xf32>
    %91 = arith.addf %78, %90 : vector<2x32xf32>
    %c0_52 = arith.constant 0 : index
    %c0_53 = arith.constant 0 : index
    %92 = vector.load %arg15[%c0_52, %c0_53] : memref<1x32xf32, #tpu.memory_space<vmem>>, vector<1x32xf32>
    %c0_54 = arith.constant 0 : index
    %c0_55 = arith.constant 0 : index
    %93 = vector.load %arg16[%c0_54, %c0_55] : memref<1x32xf32, #tpu.memory_space<vmem>>, vector<1x32xf32>
    %cst_56 = arith.constant dense<0.000000e+00> : vector<2xf32>
    %94 = vector.multi_reduction <add>, %91, %cst_56 [1] : vector<2x32xf32> to vector<2xf32>
    %95 = vector.shape_cast %94 : vector<2xf32> to vector<2x1xf32>
    %cst_57 = arith.constant 3.200000e+01 : f32
    %96 = vector.broadcast %cst_57 : f32 to vector<2x1xf32>
    %97 = arith.divf %95, %96 : vector<2x1xf32>
    %98 = vector.broadcast %97 : vector<2x1xf32> to vector<2x32xf32>
    %99 = arith.subf %91, %98 : vector<2x32xf32>
    %100 = arith.mulf %99, %99 : vector<2x32xf32>
    %cst_58 = arith.constant dense<0.000000e+00> : vector<2xf32>
    %101 = vector.multi_reduction <add>, %100, %cst_58 [1] : vector<2x32xf32> to vector<2xf32>
    %102 = vector.shape_cast %101 : vector<2xf32> to vector<2x1xf32>
    %cst_59 = arith.constant 3.200000e+01 : f32
    %103 = vector.broadcast %cst_59 : f32 to vector<2x1xf32>
    %104 = arith.divf %102, %103 : vector<2x1xf32>
    %105 = vector.broadcast %97 : vector<2x1xf32> to vector<2x32xf32>
    %106 = arith.subf %91, %105 : vector<2x32xf32>
    %cst_60 = arith.constant 9.99999974E-6 : f32
    %107 = vector.broadcast %cst_60 : f32 to vector<2x1xf32>
    %108 = arith.addf %104, %107 : vector<2x1xf32>
    %109 = math.rsqrt %108 : vector<2x1xf32>
    %110 = vector.broadcast %109 : vector<2x1xf32> to vector<2x32xf32>
    %111 = arith.mulf %106, %110 : vector<2x32xf32>
    %112 = vector.broadcast %92 : vector<1x32xf32> to vector<2x32xf32>
    %113 = arith.mulf %111, %112 : vector<2x32xf32>
    %114 = vector.broadcast %93 : vector<1x32xf32> to vector<2x32xf32>
    %115 = arith.addf %113, %114 : vector<2x32xf32>
    %c0_61 = arith.constant 0 : index
    %c0_62 = arith.constant 0 : index
    %116 = vector.load %arg17[%c0_61, %c0_62] : memref<2x32xf32, #tpu.memory_space<vmem>>, vector<2x32xf32>
    tpu.vector_store %arg17[%c0_61, %c0_62], %115 {strides = array<i32>} : memref<2x32xf32, #tpu.memory_space<vmem>>, vector<2x32xf32>,
    return
  }
  func.func @transform_0(%arg0: i32) -> (i32, i32, i32) {
    %c0_i32 = arith.constant 0 : i32
    %c0_i32_0 = arith.constant 0 : i32
    %c0_i32_1 = arith.constant 0 : i32
    return %arg0, %c0_i32, %c0_i32_0 : i32, i32, i32
  }
  func.func @transform_1(%arg0: i32) -> (i32, i32) {
    %c0_i32 = arith.constant 0 : i32
    %c0_i32_0 = arith.constant 0 : i32
    return %arg0, %c0_i32 : i32, i32
  }
  func.func @transform_2(%arg0: i32) -> (i32, i32) {
    %c0_i32 = arith.constant 0 : i32
    %c0_i32_0 = arith.constant 0 : i32
    %c0_i32_1 = arith.constant 0 : i32
    return %c0_i32, %c0_i32_0 : i32, i32
  }
  func.func @transform_3(%arg0: i32) -> (i32, i32) {
    %c0_i32 = arith.constant 0 : i32
    %c0_i32_0 = arith.constant 0 : i32
    %c0_i32_1 = arith.constant 0 : i32
    return %c0_i32, %c0_i32_0 : i32, i32
  }
  func.func @transform_4(%arg0: i32) -> (i32, i32) {
    %c0_i32 = arith.constant 0 : i32
    %c0_i32_0 = arith.constant 0 : i32
    %c0_i32_1 = arith.constant 0 : i32
    return %c0_i32, %c0_i32_0 : i32, i32
  }
  func.func @transform_5(%arg0: i32) -> (i32, i32) {
    %c0_i32 = arith.constant 0 : i32
    %c0_i32_0 = arith.constant 0 : i32
    %c0_i32_1 = arith.constant 0 : i32
    return %c0_i32, %c0_i32_0 : i32, i32
  }
  func.func @transform_6(%arg0: i32) -> (i32, i32) {
    %c0_i32 = arith.constant 0 : i32
    %c0_i32_0 = arith.constant 0 : i32
    %c0_i32_1 = arith.constant 0 : i32
    return %c0_i32, %c0_i32_0 : i32, i32
  }
  func.func @transform_7(%arg0: i32) -> (i32, i32) {
    %c0_i32 = arith.constant 0 : i32
    %c0_i32_0 = arith.constant 0 : i32
    %c0_i32_1 = arith.constant 0 : i32
    return %c0_i32, %c0_i32_0 : i32, i32
  }
  func.func @transform_8(%arg0: i32) -> (i32, i32) {
    %c0_i32 = arith.constant 0 : i32
    %c0_i32_0 = arith.constant 0 : i32
    %c0_i32_1 = arith.constant 0 : i32
    return %c0_i32, %c0_i32_0 : i32, i32
  }
  func.func @transform_9(%arg0: i32) -> (i32, i32) {
    %c0_i32 = arith.constant 0 : i32
    %c0_i32_0 = arith.constant 0 : i32
    %c0_i32_1 = arith.constant 0 : i32
    return %c0_i32, %c0_i32_0 : i32, i32
  }
  func.func @transform_10(%arg0: i32) -> (i32, i32) {
    %c0_i32 = arith.constant 0 : i32
    %c0_i32_0 = arith.constant 0 : i32
    %c0_i32_1 = arith.constant 0 : i32
    return %c0_i32, %c0_i32_0 : i32, i32
  }
  func.func @transform_11(%arg0: i32) -> (i32, i32) {
    %c0_i32 = arith.constant 0 : i32
    %c0_i32_0 = arith.constant 0 : i32
    %c0_i32_1 = arith.constant 0 : i32
    return %c0_i32, %c0_i32_0 : i32, i32
  }
  func.func @transform_12(%arg0: i32) -> (i32, i32) {
    %c0_i32 = arith.constant 0 : i32
    %c0_i32_0 = arith.constant 0 : i32
    %c0_i32_1 = arith.constant 0 : i32
    return %c0_i32, %c0_i32_0 : i32, i32
  }
  func.func @transform_13(%arg0: i32) -> (i32, i32) {
    %c0_i32 = arith.constant 0 : i32
    %c0_i32_0 = arith.constant 0 : i32
    %c0_i32_1 = arith.constant 0 : i32
    return %c0_i32, %c0_i32_0 : i32, i32
  }
  func.func @transform_14(%arg0: i32) -> (i32, i32) {
    %c0_i32 = arith.constant 0 : i32
    %c0_i32_0 = arith.constant 0 : i32
    %c0_i32_1 = arith.constant 0 : i32
    return %c0_i32, %c0_i32_0 : i32, i32
  }
  func.func @transform_15(%arg0: i32) -> (i32, i32) {
    %c0_i32 = arith.constant 0 : i32
    %c0_i32_0 = arith.constant 0 : i32
    %c0_i32_1 = arith.constant 0 : i32
    return %c0_i32, %c0_i32_0 : i32, i32
  }
  func.func @transform_16(%arg0: i32) -> (i32, i32) {
    %c0_i32 = arith.constant 0 : i32
    %c0_i32_0 = arith.constant 0 : i32
    return %arg0, %c0_i32 : i32, i32
  }
}

</mosaic_0001>

<llo_original>
// kernel: tpu_custom_call.1
$region0: #{tpu_custom_call.1}
  #allocation0 [shape = 'u32[]', space=smem, size = 0x4, offset = 0x4, fixed_abs, tag = 'smem constant byte address 0x4 - core index']
  #allocation1 [shape = 'u32[144,128]{1,0:T(1,128)}', space=vmem, size = 0x12000, scoped, tag = 'internal scratch']
  %s0 = inlined_call_operand.vmem [shape: f32[2,4,256], index: 0, kind: input, shape index: {}]
  %s1 = inlined_call_operand.vmem [shape: f32[2,16], index: 1, kind: input, shape index: {}]
  %s2 = inlined_call_operand.vmem [shape: f32[16,32], index: 2, kind: input, shape index: {}]
  %s3 = inlined_call_operand.vmem [shape: f32[1,32], index: 3, kind: input, shape index: {}]
  %s4 = inlined_call_operand.vmem [shape: f32[64,4], index: 4, kind: input, shape index: {}]
  %s5 = inlined_call_operand.vmem [shape: f32[1,32], index: 5, kind: input, shape index: {}]
  %s6 = inlined_call_operand.vmem [shape: f32[32,4], index: 6, kind: input, shape index: {}]
  %s7 = inlined_call_operand.vmem [shape: f32[4,32], index: 7, kind: input, shape index: {}]
  %s8 = inlined_call_operand.vmem [shape: f32[1,32], index: 8, kind: input, shape index: {}]
  %s9 = inlined_call_operand.vmem [shape: f32[1,32], index: 9, kind: input, shape index: {}]
  %s10 = inlined_call_operand.vmem [shape: f32[32,128], index: 10, kind: input, shape index: {}]
  %s11 = inlined_call_operand.vmem [shape: f32[1,128], index: 11, kind: input, shape index: {}]
  %s12 = inlined_call_operand.vmem [shape: f32[128,32], index: 12, kind: input, shape index: {}]
  %s13 = inlined_call_operand.vmem [shape: f32[1,32], index: 13, kind: input, shape index: {}]
  %s14 = inlined_call_operand.vmem [shape: f32[1,32], index: 14, kind: input, shape index: {}]
  %s15 = inlined_call_operand.vmem [shape: f32[1,32], index: 15, kind: input, shape index: {}]
  %s16 = inlined_call_operand.hbm [shape: f32[2,32], index: 16, kind: output, shape index: {}]
  %s17 = sld [smem:[#allocation0]]
  $region74: #{tpu_custom_call.1} parent=0
    _
  %s19 = ssub.s32 1, %s17
  %s20 = scalar_select 0, %s19, %s17
  $region1: #{tpu_custom_call.1} parent=0
    #allocation2 [shape = 'u8[1024]{0}', space=vmem, size = 0x400, scoped, tag = 'output window, operand 0, single buffered']
    #allocation3 [shape = 's32[1]{0}', space=sflag, size = 0x4, scoped, tag = 'scoped memory for tpu_custom_call.1']
    %21 = vsyncpa [#allocation3], 0
    // Predicated region
    $region2: #{tpu_custom_call.1} parent=1 // pred_check
      _
    $region3: #{tpu_custom_call.1} parent=1 // pred_check_branch
      %23 = sbr.rel (0) target = $region5
    $region4: #{tpu_custom_call.1} parent=1 // pred_region
      _
    $region5: #{tpu_custom_call.1} parent=1 // pred_fallthru
      _
    // Predicated region
    $region6: #{tpu_custom_call.1} parent=1 // pred_check
      _
    $region7: #{tpu_custom_call.1} parent=1 // pred_check_branch
      %25 = sbr.rel (0) target = $region9
    $region8: #{tpu_custom_call.1} parent=1 // pred_region
      _
    $region9: #{tpu_custom_call.1} parent=1 // pred_fallthru
      _
    // Predicated region
    $region10: #{tpu_custom_call.1} parent=1 // pred_check
      _
    $region11: #{tpu_custom_call.1} parent=1 // pred_check_branch
      %27 = sbr.rel (0) target = $region13
    $region12: #{tpu_custom_call.1} parent=1 // pred_region
      _
    $region13: #{tpu_custom_call.1} parent=1 // pred_fallthru
      _
    // Predicated region
    $region14: #{tpu_custom_call.1} parent=1 // pred_check
      _
    $region15: #{tpu_custom_call.1} parent=1 // pred_check_branch
      %29 = sbr.rel (0) target = $region17
    $region16: #{tpu_custom_call.1} parent=1 // pred_region
      _
    $region17: #{tpu_custom_call.1} parent=1 // pred_fallthru
      _
    // Predicated region
    $region18: #{tpu_custom_call.1} parent=1 // pred_check
      _
    $region19: #{tpu_custom_call.1} parent=1 // pred_check_branch
      %31 = sbr.rel (0) target = $region21
    $region20: #{tpu_custom_call.1} parent=1 // pred_region
      _
    $region21: #{tpu_custom_call.1} parent=1 // pred_fallthru
      _
    // Predicated region
    $region22: #{tpu_custom_call.1} parent=1 // pred_check
      _
    $region23: #{tpu_custom_call.1} parent=1 // pred_check_branch
      %33 = sbr.rel (0) target = $region25
    $region24: #{tpu_custom_call.1} parent=1 // pred_region
      _
    $region25: #{tpu_custom_call.1} parent=1 // pred_fallthru
      _
    // Predicated region
    $region26: #{tpu_custom_call.1} parent=1 // pred_check
      _
    $region27: #{tpu_custom_call.1} parent=1 // pred_check_branch
      %35 = sbr.rel (0) target = $region29
    $region28: #{tpu_custom_call.1} parent=1 // pred_region
      _
    $region29: #{tpu_custom_call.1} parent=1 // pred_fallthru
      _
    // Predicated region
    $region30: #{tpu_custom_call.1} parent=1 // pred_check
      _
    $region31: #{tpu_custom_call.1} parent=1 // pred_check_branch
      %37 = sbr.rel (0) target = $region33
    $region32: #{tpu_custom_call.1} parent=1 // pred_region
      _
    $region33: #{tpu_custom_call.1} parent=1 // pred_fallthru
      _
    // Predicated region
    $region34: #{tpu_custom_call.1} parent=1 // pred_check
      _
    $region35: #{tpu_custom_call.1} parent=1 // pred_check_branch
      %39 = sbr.rel (0) target = $region37
    $region36: #{tpu_custom_call.1} parent=1 // pred_region
      _
    $region37: #{tpu_custom_call.1} parent=1 // pred_fallthru
      _
    // Predicated region
    $region38: #{tpu_custom_call.1} parent=1 // pred_check
      _
    $region39: #{tpu_custom_call.1} parent=1 // pred_check_branch
      %41 = sbr.rel (0) target = $region41
    $region40: #{tpu_custom_call.1} parent=1 // pred_region
      _
    $region41: #{tpu_custom_call.1} parent=1 // pred_fallthru
      _
    // Predicated region
    $region42: #{tpu_custom_call.1} parent=1 // pred_check
      _
    $region43: #{tpu_custom_call.1} parent=1 // pred_check_branch
      %43 = sbr.rel (0) target = $region45
    $region44: #{tpu_custom_call.1} parent=1 // pred_region
      _
    $region45: #{tpu_custom_call.1} parent=1 // pred_fallthru
      _
    // Predicated region
    $region46: #{tpu_custom_call.1} parent=1 // pred_check
      _
    $region47: #{tpu_custom_call.1} parent=1 // pred_check_branch
      %45 = sbr.rel (0) target = $region49
    $region48: #{tpu_custom_call.1} parent=1 // pred_region
      _
    $region49: #{tpu_custom_call.1} parent=1 // pred_fallthru
      _
    // Predicated region
    $region50: #{tpu_custom_call.1} parent=1 // pred_check
      _
    $region51: #{tpu_custom_call.1} parent=1 // pred_check_branch
      %47 = sbr.rel (0) target = $region53
    $region52: #{tpu_custom_call.1} parent=1 // pred_region
      _
    $region53: #{tpu_custom_call.1} parent=1 // pred_fallthru
      _
    // Predicated region
    $region54: #{tpu_custom_call.1} parent=1 // pred_check
      _
    $region55: #{tpu_custom_call.1} parent=1 // pred_check_branch
      %49 = sbr.rel (0) target = $region57
    $region56: #{tpu_custom_call.1} parent=1 // pred_region
      _
    $region57: #{tpu_custom_call.1} parent=1 // pred_fallthru
      _
    // Predicated region
    $region58: #{tpu_custom_call.1} parent=1 // pred_check
      _
    $region59: #{tpu_custom_call.1} parent=1 // pred_check_branch
      %51 = sbr.rel (0) target = $region61
    $region60: #{tpu_custom_call.1} parent=1 // pred_region
      _
    $region61: #{tpu_custom_call.1} parent=1 // pred_fallthru
      _
    // Predicated region
    $region62: #{tpu_custom_call.1} parent=1 // pred_check
      _
    $region63: #{tpu_custom_call.1} parent=1 // pred_check_branch
      %53 = sbr.rel (0) target = $region65
    $region64: #{tpu_custom_call.1} parent=1 // pred_region
      _
    $region65: #{tpu_custom_call.1} parent=1 // pred_fallthru
      _
    %v54 = vld [vmem:[%s1] sm:$0x3]
    %v55 = vld [vmem:[%s2] sm:$0xff]
    %v56 = vld [vmem:[%s2 + $0x8] sm:$0xff]
    %v57 = vld [vmem:[%s3] sm:$0x1]
    %v59 = vlaneseq
    %v60 = vshrl.u32 %v59, 7
    %v61 = vsub.s32 0, %v60
    %v62 = vrot.slane %v57, %v61
    %vm64 = vcmask 130048
    %v66 = vsel %vm64, %v54, 0
    %68 = vmatprep.subr.mxu0 0.0
    %69 = vmatpush1.msra.mxu0 %v55
    %70 = vmatprep.subr.mxu0 0.0
    %71 = vmatpush1.msra.mxu0 %v56
    %72 = vmatprep.subr.mxu0 0.0
    %73 = vmatpush1.msra.mxu0 0.0
    %74 = vmatprep.subr.mxu0 0.0
    %75 = vmatpush1.msra.mxu0 0.0
    %76 = vmatprep.subr.mxu0 0.0
    %77 = vmatpush1.msra.mxu0 0.0
    %78 = vmatprep.subr.mxu0 0.0
    %79 = vmatpush1.msra.mxu0 0.0
    %80 = vmatprep.subr.mxu0 0.0
    %81 = vmatpush1.msra.mxu0 0.0
    %82 = vmatprep.subr.mxu0 0.0
    %83 = vmatpush1.msra.mxu0 0.0
    %84 = vmatprep.subr.mxu0 0.0
    %85 = vmatpush1.msra.mxu0 0.0
    %86 = vmatprep.subr.mxu0 0.0
    %87 = vmatpush1.msra.mxu0 0.0
    %88 = vmatprep.subr.mxu0 0.0
    %89 = vmatpush1.msra.mxu0 0.0
    %90 = vmatprep.subr.mxu0 0.0
    %91 = vmatpush1.msra.mxu0 0.0
    %92 = vmatprep.subr.mxu0 0.0
    %93 = vmatpush1.msra.mxu0 0.0
    %94 = vmatprep.subr.mxu0 0.0
    %95 = vmatpush1.msra.mxu0 0.0
    %96 = vmatprep.subr.mxu0 0.0
    %97 = vmatpush1.msra.mxu0 0.0
    %98 = vmatprep.subr.mxu0 0.0
    %99 = vmatpush1.msra.mxu0 0.0
    %100 = vmatprep.subr.mxu0 0.0
    %101 = vmatpush1.msra.mxu0 0.0
    %102 = vmatprep.subr.mxu0 0.0
    %103 = vmatpush1.msra.mxu0 0.0
    %104 = vmatprep.subr.mxu0 0.0
    %105 = vmatpush1.msra.mxu0 0.0
    %106 = vmatprep.subr.mxu0 0.0
    %107 = vmatpush1.msra.mxu0 0.0
    %108 = vmatprep.subr.mxu0 0.0
    %109 = vmatpush1.msra.mxu0 0.0
    %110 = vmatprep.subr.mxu0 0.0
    %111 = vmatpush1.msra.mxu0 0.0
    %112 = vmatprep.subr.mxu0 0.0
    %113 = vmatpush1.msra.mxu0 0.0
    %114 = vmatprep.subr.mxu0 0.0
    %115 = vmatpush1.msra.mxu0 0.0
    %116 = vmatprep.subr.mxu0 0.0
    %117 = vmatpush1.msra.mxu0 0.0
    %118 = vmatprep.subr.mxu0 0.0
    %119 = vmatpush1.msra.mxu0 0.0
    %120 = vmatprep.subr.mxu0 0.0
    %121 = vmatpush1.msra.mxu0 0.0
    %122 = vmatprep.subr.mxu0 0.0
    %123 = vmatpush1.msra.mxu0 0.0
    %124 = vmatprep.subr.mxu0 0.0
    %125 = vmatpush1.msra.mxu0 0.0
    %126 = vmatprep.subr.mxu0 0.0
    %127 = vmatpush1.msra.mxu0 0.0
    %128 = vmatprep.subr.mxu0 0.0
    %129 = vmatpush1.msra.mxu0 0.0
    %130 = vmatprep.subr.mxu0 0.0
    %131 = vmatpush1.msra.mxu0 0.0
    %132 = vmatprep.mubr.f32.mxu0 0.0
    %133 = vmatmul.mubr.f32.gmra.mrb[0].mxu0 %v66
    %v134 = vpop.f32.mrb[0].mxu0
    %v135 = vadd.f32 %v62, %v134
    %v136 = vpop.f32.mrb[0].mxu0
    %137 = vdwg.mxu0
    %v138 = vmul.f32 %v135, 0.35355338
    %v139 = vld [vmem:[%s6] sm:$0xff]
    %v140 = vld [vmem:[%s6 + $0x8] sm:$0xff]
    %v141 = vld [vmem:[%s6 + $0x10] sm:$0xff]
    %v142 = vld [vmem:[%s6 + $0x18] sm:$0xff]
    %v143 = vld [vmem:[%s7] sm:$0xf]
    %v144 = vld [vmem:[%s4] sm:$0xff]
    %v145 = vld [vmem:[%s4 + $0x8] sm:$0xff]
    %v146 = vld [vmem:[%s4 + $0x10] sm:$0xff]
    %v147 = vld [vmem:[%s4 + $0x18] sm:$0xff]
    %v148 = vld [vmem:[%s4 + $0x20] sm:$0xff]
    %v149 = vld [vmem:[%s4 + $0x28] sm:$0xff]
    %v150 = vld [vmem:[%s4 + $0x30] sm:$0xff]
    %v151 = vld [vmem:[%s4 + $0x38] sm:$0xff]
    %v152 = vld [vmem:[%s0] sm:$0xff]
    %v154 = vcombine.high %v152, %v152
    %vm155 = vcmask 31744
    %v157 = vsel %vm155, %v144, 0
    %v160 = vsel %vm155, %v145, 0
    %v163 = vsel %vm155, %v146, 0
    %v166 = vsel %vm155, %v147, 0
    %v169 = vsel %vm155, %v148, 0
    %v172 = vsel %vm155, %v149, 0
    %v175 = vsel %vm155, %v150, 0
    %v178 = vsel %vm155, %v151, 0
    %vm180 = vcmask 1043456
    %v181 = vsel %vm180, %v152, 0
    %v183 = vsel %vm180, %v154, 0
    %185 = vmatprep.subr.mxu0 %v183
    %186 = vmatpush1.msra.mxu0 %v181
    %187 = vmatprep.subr.mxu0 0.0
    %188 = vmatpush1.msra.mxu0 0.0
    %189 = vmatprep.subr.mxu0 0.0
    %190 = vmatpush1.msra.mxu0 0.0
    %191 = vmatprep.subr.mxu0 0.0
    %192 = vmatpush1.msra.mxu0 0.0
    %193 = vmatprep.subr.mxu0 0.0
    %194 = vmatpush1.msra.mxu0 0.0
    %195 = vmatprep.subr.mxu0 0.0
    %196 = vmatpush1.msra.mxu0 0.0
    %197 = vmatprep.subr.mxu0 0.0
    %198 = vmatpush1.msra.mxu0 0.0
    %199 = vmatprep.subr.mxu0 0.0
    %200 = vmatpush1.msra.mxu0 0.0
    %201 = vmatprep.subr.mxu0 0.0
    %202 = vmatpush1.msra.mxu0 0.0
    %203 = vmatprep.subr.mxu0 0.0
    %204 = vmatpush1.msra.mxu0 0.0
    %205 = vmatprep.subr.mxu0 0.0
    %206 = vmatpush1.msra.mxu0 0.0
    %207 = vmatprep.subr.mxu0 0.0
    %208 = vmatpush1.msra.mxu0 0.0
    %209 = vmatprep.subr.mxu0 0.0
    %210 = vmatpush1.msra.mxu0 0.0
    %211 = vmatprep.subr.mxu0 0.0
    %212 = vmatpush1.msra.mxu0 0.0
    %213 = vmatprep.subr.mxu0 0.0
    %214 = vmatpush1.msra.mxu0 0.0
    %215 = vmatprep.subr.mxu0 0.0
    %216 = vmatpush1.msra.mxu0 0.0
    %217 = vmatprep.subr.mxu0 0.0
    %218 = vmatpush1.msra.mxu0 0.0
    %219 = vmatprep.subr.mxu0 0.0
    %220 = vmatpush1.msra.mxu0 0.0
    %221 = vmatprep.subr.mxu0 0.0
    %222 = vmatpush1.msra.mxu0 0.0
    %223 = vmatprep.subr.mxu0 0.0
    %224 = vmatpush1.msra.mxu0 0.0
    %225 = vmatprep.subr.mxu0 0.0
    %226 = vmatpush1.msra.mxu0 0.0
    %227 = vmatprep.subr.mxu0 0.0
    %228 = vmatpush1.msra.mxu0 0.0
    %229 = vmatprep.subr.mxu0 0.0
    %230 = vmatpush1.msra.mxu0 0.0
    %231 = vmatprep.subr.mxu0 0.0
    %232 = vmatpush1.msra.mxu0 0.0
    %233 = vmatprep.subr.mxu0 0.0
    %234 = vmatpush1.msra.mxu0 0.0
    %235 = vmatprep.subr.mxu0 0.0
    %236 = vmatpush1.msra.mxu0 0.0
    %237 = vmatprep.subr.mxu0 0.0
    %238 = vmatpush1.msra.mxu0 0.0
    %239 = vmatprep.subr.mxu0 0.0
    %240 = vmatpush1.msra.mxu0 0.0
    %241 = vmatprep.subr.mxu0 0.0
    %242 = vmatpush1.msra.mxu0 0.0
    %243 = vmatprep.subr.mxu0 0.0
    %244 = vmatpush1.msra.mxu0 0.0
    %245 = vmatprep.subr.mxu0 0.0
    %246 = vmatpush1.msra.mxu0 0.0
    %247 = vmatprep.subr.mxu0 0.0
    %248 = vmatpush1.msra.mxu0 0.0
    %249 = vmatprep.mubr.f32.mxu0 0.0
    %250 = vmatmul.mubr.f32.gmra.mrb[0].mxu0 %v157
    %v251 = vpop.f32.mrb[0].mxu0
    %v252 = vadd.f32 0.0, %v251
    %v253 = vpop.f32.mrb[0].mxu0
    %v254 = vadd.f32 0.0, %v253
    %255 = vmatprep.mubr.f32.mxu0 0.0
    %256 = vmatmul.mubr.f32.gmra.mrb[0].mxu0 %v160
    %v257 = vpop.f32.mrb[0].mxu0
    %v258 = vadd.f32 0.0, %v257
    %v259 = vpop.f32.mrb[0].mxu0
    %v260 = vadd.f32 0.0, %v259
    %261 = vmatprep.mubr.f32.mxu0 0.0
    %262 = vmatmul.mubr.f32.gmra.mrb[0].mxu0 %v163
    %v263 = vpop.f32.mrb[0].mxu0
    %v264 = vadd.f32 0.0, %v263
    %v265 = vpop.f32.mrb[0].mxu0
    %v266 = vadd.f32 0.0, %v265
    %267 = vmatprep.mubr.f32.mxu0 0.0
    %268 = vmatmul.mubr.f32.gmra.mrb[0].mxu0 %v166
    %v269 = vpop.f32.mrb[0].mxu0
    %v270 = vadd.f32 0.0, %v269
    %v271 = vpop.f32.mrb[0].mxu0
    %v272 = vadd.f32 0.0, %v271
    %273 = vmatprep.mubr.f32.mxu0 0.0
    %274 = vmatmul.mubr.f32.gmra.mrb[0].mxu0 %v169
    %v275 = vpop.f32.mrb[0].mxu0
    %v276 = vadd.f32 0.0, %v275
    %v277 = vpop.f32.mrb[0].mxu0
    %v278 = vadd.f32 0.0, %v277
    %279 = vmatprep.mubr.f32.mxu0 0.0
    %280 = vmatmul.mubr.f32.gmra.mrb[0].mxu0 %v172
    %v281 = vpop.f32.mrb[0].mxu0
    %v282 = vadd.f32 0.0, %v281
    %v283 = vpop.f32.mrb[0].mxu0
    %v284 = vadd.f32 0.0, %v283
    %285 = vmatprep.mubr.f32.mxu0 0.0
    %286 = vmatmul.mubr.f32.gmra.mrb[0].mxu0 %v175
    %v287 = vpop.f32.mrb[0].mxu0
    %v288 = vadd.f32 0.0, %v287
    %v289 = vpop.f32.mrb[0].mxu0
    %v290 = vadd.f32 0.0, %v289
    %291 = vmatprep.mubr.f32.mxu0 0.0
    %292 = vmatmul.mubr.f32.gmra.mrb[0].mxu0 %v178
    %v293 = vpop.f32.mrb[0].mxu0
    %v294 = vadd.f32 0.0, %v293
    %v295 = vpop.f32.mrb[0].mxu0
    %v296 = vadd.f32 0.0, %v295
    %297 = vdwg.mxu0
    %v298 = vlaneseq
    %v299 = vshrl.u32 %v298, 7
    %v300 = vsub.s32 0, %v299
    %v301 = vrot.slane %v138, %v300
    %v302 = vmul.f32 %v143, %v301
    %vm303 = vcmask 261120
    %v305 = vsel %vm303, %v302, 0
    %307 = vmatprep.subr.mxu0 %v254
    %308 = vmatpush1.msra.mxu0 %v252
    %309 = vmatprep.subr.mxu0 %v260
    %310 = vmatpush1.msra.mxu0 %v258
    %311 = vmatprep.subr.mxu0 %v266
    %312 = vmatpush1.msra.mxu0 %v264
    %313 = vmatprep.subr.mxu0 %v272
    %314 = vmatpush1.msra.mxu0 %v270
    %315 = vmatprep.subr.mxu0 0.0
    %316 = vmatpush1.msra.mxu0 0.0
    %317 = vmatprep.subr.mxu0 0.0
    %318 = vmatpush1.msra.mxu0 0.0
    %319 = vmatprep.subr.mxu0 0.0
    %320 = vmatpush1.msra.mxu0 0.0
    %321 = vmatprep.subr.mxu0 0.0
    %322 = vmatpush1.msra.mxu0 0.0
    %323 = vmatprep.subr.mxu0 0.0
    %324 = vmatpush1.msra.mxu0 0.0
    %325 = vmatprep.subr.mxu0 0.0
    %326 = vmatpush1.msra.mxu0 0.0
    %327 = vmatprep.subr.mxu0 0.0
    %328 = vmatpush1.msra.mxu0 0.0
    %329 = vmatprep.subr.mxu0 0.0
    %330 = vmatpush1.msra.mxu0 0.0
    %331 = vmatprep.subr.mxu0 0.0
    %332 = vmatpush1.msra.mxu0 0.0
    %333 = vmatprep.subr.mxu0 0.0
    %334 = vmatpush1.msra.mxu0 0.0
    %335 = vmatprep.subr.mxu0 0.0
    %336 = vmatpush1.msra.mxu0 0.0
    %337 = vmatprep.subr.mxu0 0.0
    %338 = vmatpush1.msra.mxu0 0.0
    %339 = vmatprep.subr.mxu0 0.0
    %340 = vmatpush1.msra.mxu0 0.0
    %341 = vmatprep.subr.mxu0 0.0
    %342 = vmatpush1.msra.mxu0 0.0
    %343 = vmatprep.subr.mxu0 0.0
    %344 = vmatpush1.msra.mxu0 0.0
    %345 = vmatprep.subr.mxu0 0.0
    %346 = vmatpush1.msra.mxu0 0.0
    %347 = vmatprep.subr.mxu0 0.0
    %348 = vmatpush1.msra.mxu0 0.0
    %349 = vmatprep.subr.mxu0 0.0
    %350 = vmatpush1.msra.mxu0 0.0
    %351 = vmatprep.subr.mxu0 0.0
    %352 = vmatpush1.msra.mxu0 0.0
    %353 = vmatprep.subr.mxu0 0.0
    %354 = vmatpush1.msra.mxu0 0.0
    %355 = vmatprep.subr.mxu0 0.0
    %356 = vmatpush1.msra.mxu0 0.0
    %357 = vmatprep.subr.mxu0 0.0
    %358 = vmatpush1.msra.mxu0 0.0
    %359 = vmatprep.subr.mxu0 0.0
    %360 = vmatpush1.msra.mxu0 0.0
    %361 = vmatprep.subr.mxu0 0.0
    %362 = vmatpush1.msra.mxu0 0.0
    %363 = vmatprep.subr.mxu0 0.0
    %364 = vmatpush1.msra.mxu0 0.0
    %365 = vmatprep.subr.mxu0 0.0
    %366 = vmatpush1.msra.mxu0 0.0
    %367 = vmatprep.subr.mxu0 0.0
    %368 = vmatpush1.msra.mxu0 0.0
    %369 = vmatprep.subr.mxu0 0.0
    %370 = vmatpush1.msra.mxu0 0.0
    %371 = vmatprep.mubr.f32.mxu0 0.0
    %372 = vmatmul.mubr.f32.gmra.mrb[0].mxu0 %v305
    %v373 = vpop.f32.mrb[0].mxu0
    %v374 = vadd.f32 0.0, %v373
    %v375 = vpop.f32.mrb[0].mxu0
    %v376 = vadd.f32 0.0, %v375
    %377 = vdwg.mxu0
    %v378 = vsel %vm180, %v374, -inf
    %v379 = vsel %vm180, %v376, -inf
    %v380 = vmax.f32 %v378, %v379
    %381 = vmax.xlane.f32.xlu0 %v380
    %v382 = vpop.xlane.xlu0 %381
    %v383 = vsub.f32 %v374, %v382
    %v384 = vsub.f32 %v376, %v382
    %v385 = vmul.f32 %v383, 1.442695
    %v386 = vpow.pop %v385
    %v387 = vmul.f32 %v384, 1.442695
    %v388 = vpow.pop %v387
    %v390 = vsel %vm155, %v139, 0
    %v393 = vsel %vm155, %v140, 0
    %v396 = vsel %vm155, %v141, 0
    %v399 = vsel %vm155, %v142, 0
    %v402 = vsel %vm180, %v386, 0
    %v405 = vsel %vm180, %v388, 0
    %407 = vmatprep.subr.mxu0 %v405
    %408 = vmatpush1.msra.mxu0 %v402
    %409 = vmatprep.subr.mxu0 0.0
    %410 = vmatpush1.msra.mxu0 0.0
    %411 = vmatprep.subr.mxu0 0.0
    %412 = vmatpush1.msra.mxu0 0.0
    %413 = vmatprep.subr.mxu0 0.0
    %414 = vmatpush1.msra.mxu0 0.0
    %415 = vmatprep.subr.mxu0 0.0
    %416 = vmatpush1.msra.mxu0 0.0
    %417 = vmatprep.subr.mxu0 0.0
    %418 = vmatpush1.msra.mxu0 0.0
    %419 = vmatprep.subr.mxu0 0.0
    %420 = vmatpush1.msra.mxu0 0.0
    %421 = vmatprep.subr.mxu0 0.0
    %422 = vmatpush1.msra.mxu0 0.0
    %423 = vmatprep.subr.mxu0 0.0
    %424 = vmatpush1.msra.mxu0 0.0
    %425 = vmatprep.subr.mxu0 0.0
    %426 = vmatpush1.msra.mxu0 0.0
    %427 = vmatprep.subr.mxu0 0.0
    %428 = vmatpush1.msra.mxu0 0.0
    %429 = vmatprep.subr.mxu0 0.0
    %430 = vmatpush1.msra.mxu0 0.0
    %431 = vmatprep.subr.mxu0 0.0
    %432 = vmatpush1.msra.mxu0 0.0
    %433 = vmatprep.subr.mxu0 0.0
    %434 = vmatpush1.msra.mxu0 0.0
    %435 = vmatprep.subr.mxu0 0.0
    %436 = vmatpush1.msra.mxu0 0.0
    %437 = vmatprep.subr.mxu0 0.0
    %438 = vmatpush1.msra.mxu0 0.0
    %439 = vmatprep.subr.mxu0 0.0
    %440 = vmatpush1.msra.mxu0 0.0
    %441 = vmatprep.subr.mxu0 0.0
    %442 = vmatpush1.msra.mxu0 0.0
    %443 = vmatprep.subr.mxu0 0.0
    %444 = vmatpush1.msra.mxu0 0.0
    %445 = vmatprep.subr.mxu0 0.0
    %446 = vmatpush1.msra.mxu0 0.0
    %447 = vmatprep.subr.mxu0 0.0
    %448 = vmatpush1.msra.mxu0 0.0
    %449 = vmatprep.subr.mxu0 0.0
    %450 = vmatpush1.msra.mxu0 0.0
    %451 = vmatprep.subr.mxu0 0.0
    %452 = vmatpush1.msra.mxu0 0.0
    %453 = vmatprep.subr.mxu0 0.0
    %454 = vmatpush1.msra.mxu0 0.0
    %455 = vmatprep.subr.mxu0 0.0
    %456 = vmatpush1.msra.mxu0 0.0
    %457 = vmatprep.subr.mxu0 0.0
    %458 = vmatpush1.msra.mxu0 0.0
    %459 = vmatprep.subr.mxu0 0.0
    %460 = vmatpush1.msra.mxu0 0.0
    %461 = vmatprep.subr.mxu0 0.0
    %462 = vmatpush1.msra.mxu0 0.0
    %463 = vmatprep.subr.mxu0 0.0
    %464 = vmatpush1.msra.mxu0 0.0
    %465 = vmatprep.subr.mxu0 0.0
    %466 = vmatpush1.msra.mxu0 0.0
    %467 = vmatprep.subr.mxu0 0.0
    %468 = vmatpush1.msra.mxu0 0.0
    %469 = vmatprep.subr.mxu0 0.0
    %470 = vmatpush1.msra.mxu0 0.0
    %471 = vmatprep.mubr.f32.mxu0 0.0
    %472 = vmatmul.mubr.f32.gmra.mrb[0].mxu0 %v390
    %v473 = vpop.f32.mrb[0].mxu0
    %v474 = vadd.f32 0.0, %v473
    %v475 = vpop.f32.mrb[0].mxu0
    %v476 = vadd.f32 0.0, %v475
    %477 = vmatprep.mubr.f32.mxu0 0.0
    %478 = vmatmul.mubr.f32.gmra.mrb[0].mxu0 %v393
    %v479 = vpop.f32.mrb[0].mxu0
    %v480 = vadd.f32 0.0, %v479
    %v481 = vpop.f32.mrb[0].mxu0
    %v482 = vadd.f32 0.0, %v481
    %483 = vmatprep.mubr.f32.mxu0 0.0
    %484 = vmatmul.mubr.f32.gmra.mrb[0].mxu0 %v396
    %v485 = vpop.f32.mrb[0].mxu0
    %v486 = vadd.f32 0.0, %v485
    %v487 = vpop.f32.mrb[0].mxu0
    %v488 = vadd.f32 0.0, %v487
    %489 = vmatprep.mubr.f32.mxu0 0.0
    %490 = vmatmul.mubr.f32.gmra.mrb[0].mxu0 %v399
    %v491 = vpop.f32.mrb[0].mxu0
    %v492 = vadd.f32 0.0, %v491
    %v493 = vpop.f32.mrb[0].mxu0
    %v494 = vadd.f32 0.0, %v493
    %495 = vdwg.mxu0
    %v496 = vmul.f32 %v276, %v474
    %v497 = vmul.f32 %v278, %v476
    %v498 = vmul.f32 %v282, %v480
    %v499 = vmul.f32 %v284, %v482
    %v500 = vmul.f32 %v288, %v486
    %v501 = vmul.f32 %v290, %v488
    %v502 = vmul.f32 %v294, %v492
    %v503 = vmul.f32 %v296, %v494
    %504 = vmatprep.subr.mxu0 %v497
    %505 = vmatpush1.xpose.msra.mxu0 %v496
    %506 = vmatprep.subr.mxu0 %v499
    %507 = vmatpush1.xpose.msra.mxu0 %v498
    %508 = vmatprep.subr.mxu0 %v501
    %509 = vmatpush1.xpose.msra.mxu0 %v500
    %510 = vmatprep.subr.mxu0 %v503
    %511 = vmatpush1.xpose.msra.mxu0 %v502
    %512 = vmatprep.subr.mxu0 0.0
    %513 = vmatpush1.xpose.msra.mxu0 0.0
    %514 = vmatprep.subr.mxu0 0.0
    %515 = vmatpush1.xpose.msra.mxu0 0.0
    %516 = vmatprep.subr.mxu0 0.0
    %517 = vmatpush1.xpose.msra.mxu0 0.0
    %518 = vmatprep.subr.mxu0 0.0
    %519 = vmatpush1.xpose.msra.mxu0 0.0
    %520 = vmatprep.subr.mxu0 0.0
    %521 = vmatpush1.xpose.msra.mxu0 0.0
    %522 = vmatprep.subr.mxu0 0.0
    %523 = vmatpush1.xpose.msra.mxu0 0.0
    %524 = vmatprep.subr.mxu0 0.0
    %525 = vmatpush1.xpose.msra.mxu0 0.0
    %526 = vmatprep.subr.mxu0 0.0
    %527 = vmatpush1.xpose.msra.mxu0 0.0
    %528 = vmatprep.subr.mxu0 0.0
    %529 = vmatpush1.xpose.msra.mxu0 0.0
    %530 = vmatprep.subr.mxu0 0.0
    %531 = vmatpush1.xpose.msra.mxu0 0.0
    %532 = vmatprep.subr.mxu0 0.0
    %533 = vmatpush1.xpose.msra.mxu0 0.0
    %534 = vmatprep.subr.mxu0 0.0
    %535 = vmatpush1.xpose.msra.mxu0 0.0
    %536 = vmatprep.subr.mxu0 0.0
    %537 = vmatpush1.xpose.msra.mxu0 0.0
    %538 = vmatprep.subr.mxu0 0.0
    %539 = vmatpush1.xpose.msra.mxu0 0.0
    %540 = vmatprep.subr.mxu0 0.0
    %541 = vmatpush1.xpose.msra.mxu0 0.0
    %542 = vmatprep.subr.mxu0 0.0
    %543 = vmatpush1.xpose.msra.mxu0 0.0
    %544 = vmatprep.subr.mxu0 0.0
    %545 = vmatpush1.xpose.msra.mxu0 0.0
    %546 = vmatprep.subr.mxu0 0.0
    %547 = vmatpush1.xpose.msra.mxu0 0.0
    %548 = vmatprep.subr.mxu0 0.0
    %549 = vmatpush1.xpose.msra.mxu0 0.0
    %550 = vmatprep.subr.mxu0 0.0
    %551 = vmatpush1.xpose.msra.mxu0 0.0
    %552 = vmatprep.subr.mxu0 0.0
    %553 = vmatpush1.xpose.msra.mxu0 0.0
    %554 = vmatprep.subr.mxu0 0.0
    %555 = vmatpush1.xpose.msra.mxu0 0.0
    %556 = vmatprep.subr.mxu0 0.0
    %557 = vmatpush1.xpose.msra.mxu0 0.0
    %558 = vmatprep.subr.mxu0 0.0
    %559 = vmatpush1.xpose.msra.mxu0 0.0
    %560 = vmatprep.subr.mxu0 0.0
    %561 = vmatpush1.xpose.msra.mxu0 0.0
    %562 = vmatprep.subr.mxu0 0.0
    %563 = vmatpush1.xpose.msra.mxu0 0.0
    %564 = vmatprep.subr.mxu0 0.0
    %565 = vmatpush1.xpose.msra.mxu0 0.0
    %566 = vmatprep.subr.mxu0 0.0
    %567 = vmatpush1.xpose.msra.mxu0 0.0
    %568 = vmatprep.mubr.f32.mxu0 1.0
    %569 = vmatmul.mubr.f32.gmra.mrb[0].mxu0 1.0
    %v570 = vpop.f32.mrb[0].mxu0
    %v571 = vadd.f32 0.0, %v570
    %v572 = vpop.f32.mrb[0].mxu0
    %573 = vdwg.mxu0
    %574 = vmatprep.subr.mxu0 %v476
    %575 = vmatpush1.xpose.msra.mxu0 %v474
    %576 = vmatprep.subr.mxu0 %v482
    %577 = vmatpush1.xpose.msra.mxu0 %v480
    %578 = vmatprep.subr.mxu0 %v488
    %579 = vmatpush1.xpose.msra.mxu0 %v486
    %580 = vmatprep.subr.mxu0 %v494
    %581 = vmatpush1.xpose.msra.mxu0 %v492
    %582 = vmatprep.subr.mxu0 0.0
    %583 = vmatpush1.xpose.msra.mxu0 0.0
    %584 = vmatprep.subr.mxu0 0.0
    %585 = vmatpush1.xpose.msra.mxu0 0.0
    %586 = vmatprep.subr.mxu0 0.0
    %587 = vmatpush1.xpose.msra.mxu0 0.0
    %588 = vmatprep.subr.mxu0 0.0
    %589 = vmatpush1.xpose.msra.mxu0 0.0
    %590 = vmatprep.subr.mxu0 0.0
    %591 = vmatpush1.xpose.msra.mxu0 0.0
    %592 = vmatprep.subr.mxu0 0.0
    %593 = vmatpush1.xpose.msra.mxu0 0.0
    %594 = vmatprep.subr.mxu0 0.0
    %595 = vmatpush1.xpose.msra.mxu0 0.0
    %596 = vmatprep.subr.mxu0 0.0
    %597 = vmatpush1.xpose.msra.mxu0 0.0
    %598 = vmatprep.subr.mxu0 0.0
    %599 = vmatpush1.xpose.msra.mxu0 0.0
    %600 = vmatprep.subr.mxu0 0.0
    %601 = vmatpush1.xpose.msra.mxu0 0.0
    %602 = vmatprep.subr.mxu0 0.0
    %603 = vmatpush1.xpose.msra.mxu0 0.0
    %604 = vmatprep.subr.mxu0 0.0
    %605 = vmatpush1.xpose.msra.mxu0 0.0
    %606 = vmatprep.subr.mxu0 0.0
    %607 = vmatpush1.xpose.msra.mxu0 0.0
    %608 = vmatprep.subr.mxu0 0.0
    %609 = vmatpush1.xpose.msra.mxu0 0.0
    %610 = vmatprep.subr.mxu0 0.0
    %611 = vmatpush1.xpose.msra.mxu0 0.0
    %612 = vmatprep.subr.mxu0 0.0
    %613 = vmatpush1.xpose.msra.mxu0 0.0
    %614 = vmatprep.subr.mxu0 0.0
    %615 = vmatpush1.xpose.msra.mxu0 0.0
    %616 = vmatprep.subr.mxu0 0.0
    %617 = vmatpush1.xpose.msra.mxu0 0.0
    %618 = vmatprep.subr.mxu0 0.0
    %619 = vmatpush1.xpose.msra.mxu0 0.0
    %620 = vmatprep.subr.mxu0 0.0
    %621 = vmatpush1.xpose.msra.mxu0 0.0
    %622 = vmatprep.subr.mxu0 0.0
    %623 = vmatpush1.xpose.msra.mxu0 0.0
    %624 = vmatprep.subr.mxu0 0.0
    %625 = vmatpush1.xpose.msra.mxu0 0.0
    %626 = vmatprep.subr.mxu0 0.0
    %627 = vmatpush1.xpose.msra.mxu0 0.0
    %628 = vmatprep.subr.mxu0 0.0
    %629 = vmatpush1.xpose.msra.mxu0 0.0
    %630 = vmatprep.subr.mxu0 0.0
    %631 = vmatpush1.xpose.msra.mxu0 0.0
    %632 = vmatprep.subr.mxu0 0.0
    %633 = vmatpush1.xpose.msra.mxu0 0.0
    %634 = vmatprep.subr.mxu0 0.0
    %635 = vmatpush1.xpose.msra.mxu0 0.0
    %636 = vmatprep.subr.mxu0 0.0
    %637 = vmatpush1.xpose.msra.mxu0 0.0
    %638 = vmatprep.mubr.f32.mxu0 1.0
    %639 = vmatmul.mubr.f32.gmra.mrb[0].mxu0 1.0
    %v640 = vpop.f32.mrb[0].mxu0
    %v641 = vadd.f32 0.0, %v640
    %v642 = vpop.f32.mrb[0].mxu0
    %643 = vdwg.mxu0
    %s644 = scalar_lea.vmem %s0, 8
    %v645 = vld [vmem:[%s644] sm:$0xff]
    %v647 = vcombine.high %v645, %v645
    %v648 = vsel %vm180, %v645, 0
    %v650 = vsel %vm180, %v647, 0
    %652 = vmatprep.subr.mxu0 %v650
    %653 = vmatpush1.msra.mxu0 %v648
    %654 = vmatprep.subr.mxu0 0.0
    %655 = vmatpush1.msra.mxu0 0.0
    %656 = vmatprep.subr.mxu0 0.0
    %657 = vmatpush1.msra.mxu0 0.0
    %658 = vmatprep.subr.mxu0 0.0
    %659 = vmatpush1.msra.mxu0 0.0
    %660 = vmatprep.subr.mxu0 0.0
    %661 = vmatpush1.msra.mxu0 0.0
    %662 = vmatprep.subr.mxu0 0.0
    %663 = vmatpush1.msra.mxu0 0.0
    %664 = vmatprep.subr.mxu0 0.0
    %665 = vmatpush1.msra.mxu0 0.0
    %666 = vmatprep.subr.mxu0 0.0
    %667 = vmatpush1.msra.mxu0 0.0
    %668 = vmatprep.subr.mxu0 0.0
    %669 = vmatpush1.msra.mxu0 0.0
    %670 = vmatprep.subr.mxu0 0.0
    %671 = vmatpush1.msra.mxu0 0.0
    %672 = vmatprep.subr.mxu0 0.0
    %673 = vmatpush1.msra.mxu0 0.0
    %674 = vmatprep.subr.mxu0 0.0
    %675 = vmatpush1.msra.mxu0 0.0
    %676 = vmatprep.subr.mxu0 0.0
    %677 = vmatpush1.msra.mxu0 0.0
    %678 = vmatprep.subr.mxu0 0.0
    %679 = vmatpush1.msra.mxu0 0.0
    %680 = vmatprep.subr.mxu0 0.0
    %681 = vmatpush1.msra.mxu0 0.0
    %682 = vmatprep.subr.mxu0 0.0
    %683 = vmatpush1.msra.mxu0 0.0
    %684 = vmatprep.subr.mxu0 0.0
    %685 = vmatpush1.msra.mxu0 0.0
    %686 = vmatprep.subr.mxu0 0.0
    %687 = vmatpush1.msra.mxu0 0.0
    %688 = vmatprep.subr.mxu0 0.0
    %689 = vmatpush1.msra.mxu0 0.0
    %690 = vmatprep.subr.mxu0 0.0
    %691 = vmatpush1.msra.mxu0 0.0
    %692 = vmatprep.subr.mxu0 0.0
    %693 = vmatpush1.msra.mxu0 0.0
    %694 = vmatprep.subr.mxu0 0.0
    %695 = vmatpush1.msra.mxu0 0.0
    %696 = vmatprep.subr.mxu0 0.0
    %697 = vmatpush1.msra.mxu0 0.0
    %698 = vmatprep.subr.mxu0 0.0
    %699 = vmatpush1.msra.mxu0 0.0
    %700 = vmatprep.subr.mxu0 0.0
    %701 = vmatpush1.msra.mxu0 0.0
    %702 = vmatprep.subr.mxu0 0.0
    %703 = vmatpush1.msra.mxu0 0.0
    %704 = vmatprep.subr.mxu0 0.0
    %705 = vmatpush1.msra.mxu0 0.0
    %706 = vmatprep.subr.mxu0 0.0
    %707 = vmatpush1.msra.mxu0 0.0
    %708 = vmatprep.subr.mxu0 0.0
    %709 = vmatpush1.msra.mxu0 0.0
    %710 = vmatprep.subr.mxu0 0.0
    %711 = vmatpush1.msra.mxu0 0.0
    %712 = vmatprep.subr.mxu0 0.0
    %713 = vmatpush1.msra.mxu0 0.0
    %714 = vmatprep.subr.mxu0 0.0
    %715 = vmatpush1.msra.mxu0 0.0
    %716 = vmatprep.mubr.f32.mxu0 0.0
    %717 = vmatmul.mubr.f32.gmra.mrb[0].mxu0 %v157
    %v718 = vpop.f32.mrb[0].mxu0
    %v719 = vadd.f32 0.0, %v718
    %v720 = vpop.f32.mrb[0].mxu0
    %v721 = vadd.f32 0.0, %v720
    %722 = vmatprep.mubr.f32.mxu0 0.0
    %723 = vmatmul.mubr.f32.gmra.mrb[0].mxu0 %v160
    %v724 = vpop.f32.mrb[0].mxu0
    %v725 = vadd.f32 0.0, %v724
    %v726 = vpop.f32.mrb[0].mxu0
    %v727 = vadd.f32 0.0, %v726
    %728 = vmatprep.mubr.f32.mxu0 0.0
    %729 = vmatmul.mubr.f32.gmra.mrb[0].mxu0 %v163
    %v730 = vpop.f32.mrb[0].mxu0
    %v731 = vadd.f32 0.0, %v730
    %v732 = vpop.f32.mrb[0].mxu0
    %v733 = vadd.f32 0.0, %v732
    %734 = vmatprep.mubr.f32.mxu0 0.0
    %735 = vmatmul.mubr.f32.gmra.mrb[0].mxu0 %v166
    %v736 = vpop.f32.mrb[0].mxu0
    %v737 = vadd.f32 0.0, %v736
    %v738 = vpop.f32.mrb[0].mxu0
    %v739 = vadd.f32 0.0, %v738
    %740 = vmatprep.mubr.f32.mxu0 0.0
    %741 = vmatmul.mubr.f32.gmra.mrb[0].mxu0 %v169
    %v742 = vpop.f32.mrb[0].mxu0
    %v743 = vadd.f32 0.0, %v742
    %v744 = vpop.f32.mrb[0].mxu0
    %v745 = vadd.f32 0.0, %v744
    %746 = vmatprep.mubr.f32.mxu0 0.0
    %747 = vmatmul.mubr.f32.gmra.mrb[0].mxu0 %v172
    %v748 = vpop.f32.mrb[0].mxu0
    %v749 = vadd.f32 0.0, %v748
    %v750 = vpop.f32.mrb[0].mxu0
    %v751 = vadd.f32 0.0, %v750
    %752 = vmatprep.mubr.f32.mxu0 0.0
    %753 = vmatmul.mubr.f32.gmra.mrb[0].mxu0 %v175
    %v754 = vpop.f32.mrb[0].mxu0
    %v755 = vadd.f32 0.0, %v754
    %v756 = vpop.f32.mrb[0].mxu0
    %v757 = vadd.f32 0.0, %v756
    %758 = vmatprep.mubr.f32.mxu0 0.0
    %759 = vmatmul.mubr.f32.gmra.mrb[0].mxu0 %v178
    %v760 = vpop.f32.mrb[0].mxu0
    %v761 = vadd.f32 0.0, %v760
    %v762 = vpop.f32.mrb[0].mxu0
    %v763 = vadd.f32 0.0, %v762
    %764 = vdwg.mxu0
    %v765 = vlaneseq
    %v766 = vshrl.u32 %v765, 7
    %v767 = vsub.s32 1, %v766
    %v768 = vrot.slane %v138, %v767
    %v769 = vmul.f32 %v143, %v768
    %v771 = vsel %vm303, %v769, 0
    %773 = vmatprep.subr.mxu0 %v721
    %774 = vmatpush1.msra.mxu0 %v719
    %775 = vmatprep.subr.mxu0 %v727
    %776 = vmatpush1.msra.mxu0 %v725
    %777 = vmatprep.subr.mxu0 %v733
    %778 = vmatpush1.msra.mxu0 %v731
    %779 = vmatprep.subr.mxu0 %v739
    %780 = vmatpush1.msra.mxu0 %v737
    %781 = vmatprep.subr.mxu0 0.0
    %782 = vmatpush1.msra.mxu0 0.0
    %783 = vmatprep.subr.mxu0 0.0
    %784 = vmatpush1.msra.mxu0 0.0
    %785 = vmatprep.subr.mxu0 0.0
    %786 = vmatpush1.msra.mxu0 0.0
    %787 = vmatprep.subr.mxu0 0.0
    %788 = vmatpush1.msra.mxu0 0.0
    %789 = vmatprep.subr.mxu0 0.0
    %790 = vmatpush1.msra.mxu0 0.0
    %791 = vmatprep.subr.mxu0 0.0
    %792 = vmatpush1.msra.mxu0 0.0
    %793 = vmatprep.subr.mxu0 0.0
    %794 = vmatpush1.msra.mxu0 0.0
    %795 = vmatprep.subr.mxu0 0.0
    %796 = vmatpush1.msra.mxu0 0.0
    %797 = vmatprep.subr.mxu0 0.0
    %798 = vmatpush1.msra.mxu0 0.0
    %799 = vmatprep.subr.mxu0 0.0
    %800 = vmatpush1.msra.mxu0 0.0
    %801 = vmatprep.subr.mxu0 0.0
    %802 = vmatpush1.msra.mxu0 0.0
    %803 = vmatprep.subr.mxu0 0.0
    %804 = vmatpush1.msra.mxu0 0.0
    %805 = vmatprep.subr.mxu0 0.0
    %806 = vmatpush1.msra.mxu0 0.0
    %807 = vmatprep.subr.mxu0 0.0
    %808 = vmatpush1.msra.mxu0 0.0
    %809 = vmatprep.subr.mxu0 0.0
    %810 = vmatpush1.msra.mxu0 0.0
    %811 = vmatprep.subr.mxu0 0.0
    %812 = vmatpush1.msra.mxu0 0.0
    %813 = vmatprep.subr.mxu0 0.0
    %814 = vmatpush1.msra.mxu0 0.0
    %815 = vmatprep.subr.mxu0 0.0
    %816 = vmatpush1.msra.mxu0 0.0
    %817 = vmatprep.subr.mxu0 0.0
    %818 = vmatpush1.msra.mxu0 0.0
    %819 = vmatprep.subr.mxu0 0.0
    %820 = vmatpush1.msra.mxu0 0.0
    %821 = vmatprep.subr.mxu0 0.0
    %822 = vmatpush1.msra.mxu0 0.0
    %823 = vmatprep.subr.mxu0 0.0
    %824 = vmatpush1.msra.mxu0 0.0
    %825 = vmatprep.subr.mxu0 0.0
    %826 = vmatpush1.msra.mxu0 0.0
    %827 = vmatprep.subr.mxu0 0.0
    %828 = vmatpush1.msra.mxu0 0.0
    %829 = vmatprep.subr.mxu0 0.0
    %830 = vmatpush1.msra.mxu0 0.0
    %831 = vmatprep.subr.mxu0 0.0
    %832 = vmatpush1.msra.mxu0 0.0
    %833 = vmatprep.subr.mxu0 0.0
    %834 = vmatpush1.msra.mxu0 0.0
    %835 = vmatprep.subr.mxu0 0.0
    %836 = vmatpush1.msra.mxu0 0.0
    %837 = vmatprep.mubr.f32.mxu0 0.0
    %838 = vmatmul.mubr.f32.gmra.mrb[0].mxu0 %v771
    %v839 = vpop.f32.mrb[0].mxu0
    %v840 = vadd.f32 0.0, %v839
    %v841 = vpop.f32.mrb[0].mxu0
    %v842 = vadd.f32 0.0, %v841
    %843 = vdwg.mxu0
    %v844 = vsel %vm180, %v840, -inf
    %v845 = vsel %vm180, %v842, -inf
    %v846 = vmax.f32 %v844, %v845
    %847 = vmax.xlane.f32.xlu0 %v846
    %v848 = vpop.xlane.xlu0 %847
    %v849 = vsub.f32 %v840, %v848
    %v850 = vsub.f32 %v842, %v848
    %v851 = vmul.f32 %v849, 1.442695
    %v852 = vpow.pop %v851
    %v853 = vmul.f32 %v850, 1.442695
    %v854 = vpow.pop %v853
    %v856 = vsel %vm180, %v852, 0
    %v859 = vsel %vm180, %v854, 0
    %861 = vmatprep.subr.mxu0 %v859
    %862 = vmatpush1.msra.mxu0 %v856
    %863 = vmatprep.subr.mxu0 0.0
    %864 = vmatpush1.msra.mxu0 0.0
    %865 = vmatprep.subr.mxu0 0.0
    %866 = vmatpush1.msra.mxu0 0.0
    %867 = vmatprep.subr.mxu0 0.0
    %868 = vmatpush1.msra.mxu0 0.0
    %869 = vmatprep.subr.mxu0 0.0
    %870 = vmatpush1.msra.mxu0 0.0
    %871 = vmatprep.subr.mxu0 0.0
    %872 = vmatpush1.msra.mxu0 0.0
    %873 = vmatprep.subr.mxu0 0.0
    %874 = vmatpush1.msra.mxu0 0.0
    %875 = vmatprep.subr.mxu0 0.0
    %876 = vmatpush1.msra.mxu0 0.0
    %877 = vmatprep.subr.mxu0 0.0
    %878 = vmatpush1.msra.mxu0 0.0
    %879 = vmatprep.subr.mxu0 0.0
    %880 = vmatpush1.msra.mxu0 0.0
    %881 = vmatprep.subr.mxu0 0.0
    %882 = vmatpush1.msra.mxu0 0.0
    %883 = vmatprep.subr.mxu0 0.0
    %884 = vmatpush1.msra.mxu0 0.0
    %885 = vmatprep.subr.mxu0 0.0
    %886 = vmatpush1.msra.mxu0 0.0
    %887 = vmatprep.subr.mxu0 0.0
    %888 = vmatpush1.msra.mxu0 0.0
    %889 = vmatprep.subr.mxu0 0.0
    %890 = vmatpush1.msra.mxu0 0.0
    %891 = vmatprep.subr.mxu0 0.0
    %892 = vmatpush1.msra.mxu0 0.0
    %893 = vmatprep.subr.mxu0 0.0
    %894 = vmatpush1.msra.mxu0 0.0
    %895 = vmatprep.subr.mxu0 0.0
    %896 = vmatpush1.msra.mxu0 0.0
    %897 = vmatprep.subr.mxu0 0.0
    %898 = vmatpush1.msra.mxu0 0.0
    %899 = vmatprep.subr.mxu0 0.0
    %900 = vmatpush1.msra.mxu0 0.0
    %901 = vmatprep.subr.mxu0 0.0
    %902 = vmatpush1.msra.mxu0 0.0
    %903 = vmatprep.subr.mxu0 0.0
    %904 = vmatpush1.msra.mxu0 0.0
    %905 = vmatprep.subr.mxu0 0.0
    %906 = vmatpush1.msra.mxu0 0.0
    %907 = vmatprep.subr.mxu0 0.0
    %908 = vmatpush1.msra.mxu0 0.0
    %909 = vmatprep.subr.mxu0 0.0
    %910 = vmatpush1.msra.mxu0 0.0
    %911 = vmatprep.subr.mxu0 0.0
    %912 = vmatpush1.msra.mxu0 0.0
    %913 = vmatprep.subr.mxu0 0.0
    %914 = vmatpush1.msra.mxu0 0.0
    %915 = vmatprep.subr.mxu0 0.0
    %916 = vmatpush1.msra.mxu0 0.0
    %917 = vmatprep.subr.mxu0 0.0
    %918 = vmatpush1.msra.mxu0 0.0
    %919 = vmatprep.subr.mxu0 0.0
    %920 = vmatpush1.msra.mxu0 0.0
    %921 = vmatprep.subr.mxu0 0.0
    %922 = vmatpush1.msra.mxu0 0.0
    %923 = vmatprep.subr.mxu0 0.0
    %924 = vmatpush1.msra.mxu0 0.0
    %925 = vmatprep.mubr.f32.mxu0 0.0
    %926 = vmatmul.mubr.f32.gmra.mrb[0].mxu0 %v390
    %v927 = vpop.f32.mrb[0].mxu0
    %v928 = vadd.f32 0.0, %v927
    %v929 = vpop.f32.mrb[0].mxu0
    %v930 = vadd.f32 0.0, %v929
    %931 = vmatprep.mubr.f32.mxu0 0.0
    %932 = vmatmul.mubr.f32.gmra.mrb[0].mxu0 %v393
    %v933 = vpop.f32.mrb[0].mxu0
    %v934 = vadd.f32 0.0, %v933
    %v935 = vpop.f32.mrb[0].mxu0
    %v936 = vadd.f32 0.0, %v935
    %937 = vmatprep.mubr.f32.mxu0 0.0
    %938 = vmatmul.mubr.f32.gmra.mrb[0].mxu0 %v396
    %v939 = vpop.f32.mrb[0].mxu0
    %v940 = vadd.f32 0.0, %v939
    %v941 = vpop.f32.mrb[0].mxu0
    %v942 = vadd.f32 0.0, %v941
    %943 = vmatprep.mubr.f32.mxu0 0.0
    %944 = vmatmul.mubr.f32.gmra.mrb[0].mxu0 %v399
    %v945 = vpop.f32.mrb[0].mxu0
    %v946 = vadd.f32 0.0, %v945
    %v947 = vpop.f32.mrb[0].mxu0
    %v948 = vadd.f32 0.0, %v947
    %949 = vdwg.mxu0
    %v950 = vmul.f32 %v743, %v928
    %v951 = vmul.f32 %v745, %v930
    %v952 = vmul.f32 %v749, %v934
    %v953 = vmul.f32 %v751, %v936
    %v954 = vmul.f32 %v755, %v940
    %v955 = vmul.f32 %v757, %v942
    %v956 = vmul.f32 %v761, %v946
    %v957 = vmul.f32 %v763, %v948
    %958 = vmatprep.subr.mxu0 %v951
    %959 = vmatpush1.xpose.msra.mxu0 %v950
    %960 = vmatprep.subr.mxu0 %v953
    %961 = vmatpush1.xpose.msra.mxu0 %v952
    %962 = vmatprep.subr.mxu0 %v955
    %963 = vmatpush1.xpose.msra.mxu0 %v954
    %964 = vmatprep.subr.mxu0 %v957
    %965 = vmatpush1.xpose.msra.mxu0 %v956
    %966 = vmatprep.subr.mxu0 0.0
    %967 = vmatpush1.xpose.msra.mxu0 0.0
    %968 = vmatprep.subr.mxu0 0.0
    %969 = vmatpush1.xpose.msra.mxu0 0.0
    %970 = vmatprep.subr.mxu0 0.0
    %971 = vmatpush1.xpose.msra.mxu0 0.0
    %972 = vmatprep.subr.mxu0 0.0
    %973 = vmatpush1.xpose.msra.mxu0 0.0
    %974 = vmatprep.subr.mxu0 0.0
    %975 = vmatpush1.xpose.msra.mxu0 0.0
    %976 = vmatprep.subr.mxu0 0.0
    %977 = vmatpush1.xpose.msra.mxu0 0.0
    %978 = vmatprep.subr.mxu0 0.0
    %979 = vmatpush1.xpose.msra.mxu0 0.0
    %980 = vmatprep.subr.mxu0 0.0
    %981 = vmatpush1.xpose.msra.mxu0 0.0
    %982 = vmatprep.subr.mxu0 0.0
    %983 = vmatpush1.xpose.msra.mxu0 0.0
    %984 = vmatprep.subr.mxu0 0.0
    %985 = vmatpush1.xpose.msra.mxu0 0.0
    %986 = vmatprep.subr.mxu0 0.0
    %987 = vmatpush1.xpose.msra.mxu0 0.0
    %988 = vmatprep.subr.mxu0 0.0
    %989 = vmatpush1.xpose.msra.mxu0 0.0
    %990 = vmatprep.subr.mxu0 0.0
    %991 = vmatpush1.xpose.msra.mxu0 0.0
    %992 = vmatprep.subr.mxu0 0.0
    %993 = vmatpush1.xpose.msra.mxu0 0.0
    %994 = vmatprep.subr.mxu0 0.0
    %995 = vmatpush1.xpose.msra.mxu0 0.0
    %996 = vmatprep.subr.mxu0 0.0
    %997 = vmatpush1.xpose.msra.mxu0 0.0
    %998 = vmatprep.subr.mxu0 0.0
    %999 = vmatpush1.xpose.msra.mxu0 0.0
    %1000 = vmatprep.subr.mxu0 0.0
    %1001 = vmatpush1.xpose.msra.mxu0 0.0
    %1002 = vmatprep.subr.mxu0 0.0
    %1003 = vmatpush1.xpose.msra.mxu0 0.0
    %1004 = vmatprep.subr.mxu0 0.0
    %1005 = vmatpush1.xpose.msra.mxu0 0.0
    %1006 = vmatprep.subr.mxu0 0.0
    %1007 = vmatpush1.xpose.msra.mxu0 0.0
    %1008 = vmatprep.subr.mxu0 0.0
    %1009 = vmatpush1.xpose.msra.mxu0 0.0
    %1010 = vmatprep.subr.mxu0 0.0
    %1011 = vmatpush1.xpose.msra.mxu0 0.0
    %1012 = vmatprep.subr.mxu0 0.0
    %1013 = vmatpush1.xpose.msra.mxu0 0.0
    %1014 = vmatprep.subr.mxu0 0.0
    %1015 = vmatpush1.xpose.msra.mxu0 0.0
    %1016 = vmatprep.subr.mxu0 0.0
    %1017 = vmatpush1.xpose.msra.mxu0 0.0
    %1018 = vmatprep.subr.mxu0 0.0
    %1019 = vmatpush1.xpose.msra.mxu0 0.0
    %1020 = vmatprep.subr.mxu0 0.0
    %1021 = vmatpush1.xpose.msra.mxu0 0.0
    %1022 = vmatprep.mubr.f32.mxu0 1.0
    %1023 = vmatmul.mubr.f32.gmra.mrb[0].mxu0 1.0
    %v1024 = vpop.f32.mrb[0].mxu0
    %v1025 = vadd.f32 0.0, %v1024
    %v1026 = vpop.f32.mrb[0].mxu0
    %1027 = vdwg.mxu0
    %1028 = vmatprep.subr.mxu0 %v930
    %1029 = vmatpush1.xpose.msra.mxu0 %v928
    %1030 = vmatprep.subr.mxu0 %v936
    %1031 = vmatpush1.xpose.msra.mxu0 %v934
    %1032 = vmatprep.subr.mxu0 %v942
    %1033 = vmatpush1.xpose.msra.mxu0 %v940
    %1034 = vmatprep.subr.mxu0 %v948
    %1035 = vmatpush1.xpose.msra.mxu0 %v946
    %1036 = vmatprep.subr.mxu0 0.0
    %1037 = vmatpush1.xpose.msra.mxu0 0.0
    %1038 = vmatprep.subr.mxu0 0.0
    %1039 = vmatpush1.xpose.msra.mxu0 0.0
    %1040 = vmatprep.subr.mxu0 0.0
    %1041 = vmatpush1.xpose.msra.mxu0 0.0
    %1042 = vmatprep.subr.mxu0 0.0
    %1043 = vmatpush1.xpose.msra.mxu0 0.0
    %1044 = vmatprep.subr.mxu0 0.0
    %1045 = vmatpush1.xpose.msra.mxu0 0.0
    %1046 = vmatprep.subr.mxu0 0.0
    %1047 = vmatpush1.xpose.msra.mxu0 0.0
    %1048 = vmatprep.subr.mxu0 0.0
    %1049 = vmatpush1.xpose.msra.mxu0 0.0
    %1050 = vmatprep.subr.mxu0 0.0
    %1051 = vmatpush1.xpose.msra.mxu0 0.0
    %1052 = vmatprep.subr.mxu0 0.0
    %1053 = vmatpush1.xpose.msra.mxu0 0.0
    %1054 = vmatprep.subr.mxu0 0.0
    %1055 = vmatpush1.xpose.msra.mxu0 0.0
    %1056 = vmatprep.subr.mxu0 0.0
    %1057 = vmatpush1.xpose.msra.mxu0 0.0
    %1058 = vmatprep.subr.mxu0 0.0
    %1059 = vmatpush1.xpose.msra.mxu0 0.0
    %1060 = vmatprep.subr.mxu0 0.0
    %1061 = vmatpush1.xpose.msra.mxu0 0.0
    %1062 = vmatprep.subr.mxu0 0.0
    %1063 = vmatpush1.xpose.msra.mxu0 0.0
    %1064 = vmatprep.subr.mxu0 0.0
    %1065 = vmatpush1.xpose.msra.mxu0 0.0
    %1066 = vmatprep.subr.mxu0 0.0
    %1067 = vmatpush1.xpose.msra.mxu0 0.0
    %1068 = vmatprep.subr.mxu0 0.0
    %1069 = vmatpush1.xpose.msra.mxu0 0.0
    %1070 = vmatprep.subr.mxu0 0.0
    %1071 = vmatpush1.xpose.msra.mxu0 0.0
    %1072 = vmatprep.subr.mxu0 0.0
    %1073 = vmatpush1.xpose.msra.mxu0 0.0
    %1074 = vmatprep.subr.mxu0 0.0
    %1075 = vmatpush1.xpose.msra.mxu0 0.0
    %1076 = vmatprep.subr.mxu0 0.0
    %1077 = vmatpush1.xpose.msra.mxu0 0.0
    %1078 = vmatprep.subr.mxu0 0.0
    %1079 = vmatpush1.xpose.msra.mxu0 0.0
    %1080 = vmatprep.subr.mxu0 0.0
    %1081 = vmatpush1.xpose.msra.mxu0 0.0
    %1082 = vmatprep.subr.mxu0 0.0
    %1083 = vmatpush1.xpose.msra.mxu0 0.0
    %1084 = vmatprep.subr.mxu0 0.0
    %1085 = vmatpush1.xpose.msra.mxu0 0.0
    %1086 = vmatprep.subr.mxu0 0.0
    %1087 = vmatpush1.xpose.msra.mxu0 0.0
    %1088 = vmatprep.subr.mxu0 0.0
    %1089 = vmatpush1.xpose.msra.mxu0 0.0
    %1090 = vmatprep.subr.mxu0 0.0
    %1091 = vmatpush1.xpose.msra.mxu0 0.0
    %1092 = vmatprep.mubr.f32.mxu0 1.0
    %1093 = vmatmul.mubr.f32.gmra.mrb[0].mxu0 1.0
    %v1094 = vpop.f32.mrb[0].mxu0
    %v1095 = vadd.f32 0.0, %v1094
    %v1096 = vpop.f32.mrb[0].mxu0
    %1097 = vdwg.mxu0
    %v1099 = vrot.slane %v1025, 7
    %vm1101 = vcmask 1040384
    %v1102 = vsel %vm1101, %v571, %v1099
    %v1104 = vrot.slane %v1095, 7
    %v1106 = vsel %vm1101, %v641, %v1104
    %v1107 = vrcp.pop %v1106
    %v1108 = vmul.f32 %v1102, %v1107
    %v1109 = vld [vmem:[%s5] sm:$0x1]
    %v1111 = vlaneseq
    %v1112 = vshrl.u32 %v1111, 7
    %v1113 = vsub.s32 0, %v1112
    %v1114 = vrot.slane %v1109, %v1113
    %v1116 = vadd.f32 %v1108, %v1114
    %v1117 = vld [vmem:[%s8] sm:$0x1]
    %v1118 = vld [vmem:[%s9] sm:$0x1]
    %vm1119 = vcmask 254976
    %v1120 = vsel %vm1119, %v1116, 0.0
    %1121 = vadd.xlane.f32.xlu0 %v1120
    %v1122 = vpop.xlane.xlu0 %1121
    %v1123 = vrcp.pop 32.0
    %v1124 = vmul.f32 %v1122, %v1123
    %v1125 = vsub.f32 %v1116, %v1124
    %v1126 = vmul.f32 %v1125, %v1125
    %v1127 = vsel %vm1119, %v1126, 0.0
    %1128 = vadd.xlane.f32.xlu0 %v1127
    %v1129 = vpop.xlane.xlu0 %1128
    %v1130 = vmul.f32 %v1129, %v1123
    %v1131 = vadd.f32 %v1130, 1e-05
    %v1132 = vrsqrt.pop %v1131
    %v1133 = vmul.f32 %v1125, %v1132
    %v1135 = vlaneseq
    %v1136 = vshrl.u32 %v1135, 7
    %v1137 = vsub.s32 0, %v1136
    %v1138 = vrot.slane %v1117, %v1137
    %v1140 = vmul.f32 %v1133, %v1138
    %v1142 = vlaneseq
    %v1143 = vshrl.u32 %v1142, 7
    %v1144 = vsub.s32 0, %v1143
    %v1145 = vrot.slane %v1118, %v1144
    %v1147 = vadd.f32 %v1140, %v1145
    %v1148 = vld [vmem:[%s10] sm:$0xff]
    %v1149 = vld [vmem:[%s10 + $0x8] sm:$0xff]
    %v1150 = vld [vmem:[%s10 + $0x10] sm:$0xff]
    %v1151 = vld [vmem:[%s10 + $0x18] sm:$0xff]
    %v1152 = vld [vmem:[%s11] sm:$0x1]
    %v1154 = vlaneseq
    %v1155 = vshrl.u32 %v1154, 7
    %v1156 = vsub.s32 0, %v1155
    %v1157 = vrot.slane %v1152, %v1156
    %v1160 = vsel %vm303, %v1147, 0
    %1162 = vmatprep.subr.mxu0 0.0
    %1163 = vmatpush1.msra.mxu0 %v1148
    %1164 = vmatprep.subr.mxu0 0.0
    %1165 = vmatpush1.msra.mxu0 %v1149
    %1166 = vmatprep.subr.mxu0 0.0
    %1167 = vmatpush1.msra.mxu0 %v1150
    %1168 = vmatprep.subr.mxu0 0.0
    %1169 = vmatpush1.msra.mxu0 %v1151
    %1170 = vmatprep.subr.mxu0 0.0
    %1171 = vmatpush1.msra.mxu0 0.0
    %1172 = vmatprep.subr.mxu0 0.0
    %1173 = vmatpush1.msra.mxu0 0.0
    %1174 = vmatprep.subr.mxu0 0.0
    %1175 = vmatpush1.msra.mxu0 0.0
    %1176 = vmatprep.subr.mxu0 0.0
    %1177 = vmatpush1.msra.mxu0 0.0
    %1178 = vmatprep.subr.mxu0 0.0
    %1179 = vmatpush1.msra.mxu0 0.0
    %1180 = vmatprep.subr.mxu0 0.0
    %1181 = vmatpush1.msra.mxu0 0.0
    %1182 = vmatprep.subr.mxu0 0.0
    %1183 = vmatpush1.msra.mxu0 0.0
    %1184 = vmatprep.subr.mxu0 0.0
    %1185 = vmatpush1.msra.mxu0 0.0
    %1186 = vmatprep.subr.mxu0 0.0
    %1187 = vmatpush1.msra.mxu0 0.0
    %1188 = vmatprep.subr.mxu0 0.0
    %1189 = vmatpush1.msra.mxu0 0.0
    %1190 = vmatprep.subr.mxu0 0.0
    %1191 = vmatpush1.msra.mxu0 0.0
    %1192 = vmatprep.subr.mxu0 0.0
    %1193 = vmatpush1.msra.mxu0 0.0
    %1194 = vmatprep.subr.mxu0 0.0
    %1195 = vmatpush1.msra.mxu0 0.0
    %1196 = vmatprep.subr.mxu0 0.0
    %1197 = vmatpush1.msra.mxu0 0.0
    %1198 = vmatprep.subr.mxu0 0.0
    %1199 = vmatpush1.msra.mxu0 0.0
    %1200 = vmatprep.subr.mxu0 0.0
    %1201 = vmatpush1.msra.mxu0 0.0
    %1202 = vmatprep.subr.mxu0 0.0
    %1203 = vmatpush1.msra.mxu0 0.0
    %1204 = vmatprep.subr.mxu0 0.0
    %1205 = vmatpush1.msra.mxu0 0.0
    %1206 = vmatprep.subr.mxu0 0.0
    %1207 = vmatpush1.msra.mxu0 0.0
    %1208 = vmatprep.subr.mxu0 0.0
    %1209 = vmatpush1.msra.mxu0 0.0
    %1210 = vmatprep.subr.mxu0 0.0
    %1211 = vmatpush1.msra.mxu0 0.0
    %1212 = vmatprep.subr.mxu0 0.0
    %1213 = vmatpush1.msra.mxu0 0.0
    %1214 = vmatprep.subr.mxu0 0.0
    %1215 = vmatpush1.msra.mxu0 0.0
    %1216 = vmatprep.subr.mxu0 0.0
    %1217 = vmatpush1.msra.mxu0 0.0
    %1218 = vmatprep.subr.mxu0 0.0
    %1219 = vmatpush1.msra.mxu0 0.0
    %1220 = vmatprep.subr.mxu0 0.0
    %1221 = vmatpush1.msra.mxu0 0.0
    %1222 = vmatprep.subr.mxu0 0.0
    %1223 = vmatpush1.msra.mxu0 0.0
    %1224 = vmatprep.subr.mxu0 0.0
    %1225 = vmatpush1.msra.mxu0 0.0
    %1226 = vmatprep.mubr.f32.mxu0 0.0
    %1227 = vmatmul.mubr.f32.gmra.mrb[0].mxu0 %v1160
    %v1228 = vpop.f32.mrb[0].mxu0
    %v1229 = vadd.f32 %v1157, %v1228
    %v1230 = vpop.f32.mrb[0].mxu0
    %1231 = vdwg.mxu0
    %v1232 = vmax.f32 %v1229, 0.0
    %v1233 = vld [vmem:[%s12] sm:$0xff]
    %v1234 = vld [vmem:[%s12 + $0x8] sm:$0xff]
    %v1235 = vld [vmem:[%s12 + $0x10] sm:$0xff]
    %v1236 = vld [vmem:[%s12 + $0x18] sm:$0xff]
    %v1237 = vld [vmem:[%s12 + $0x20] sm:$0xff]
    %v1238 = vld [vmem:[%s12 + $0x28] sm:$0xff]
    %v1239 = vld [vmem:[%s12 + $0x30] sm:$0xff]
    %v1240 = vld [vmem:[%s12 + $0x38] sm:$0xff]
    %v1241 = vld [vmem:[%s12 + $0x40] sm:$0xff]
    %v1242 = vld [vmem:[%s12 + $0x48] sm:$0xff]
    %v1243 = vld [vmem:[%s12 + $0x50] sm:$0xff]
    %v1244 = vld [vmem:[%s12 + $0x58] sm:$0xff]
    %v1245 = vld [vmem:[%s12 + $0x60] sm:$0xff]
    %v1246 = vld [vmem:[%s12 + $0x68] sm:$0xff]
    %v1247 = vld [vmem:[%s12 + $0x70] sm:$0xff]
    %v1248 = vld [vmem:[%s12 + $0x78] sm:$0xff]
    %v1249 = vld [vmem:[%s13] sm:$0x1]
    %v1251 = vlaneseq
    %v1252 = vshrl.u32 %v1251, 7
    %v1253 = vsub.s32 0, %v1252
    %v1254 = vrot.slane %v1249, %v1253
    %1256 = vmatprep.subr.mxu0 0.0
    %1257 = vmatpush1.msra.mxu0 %v1233
    %1258 = vmatprep.subr.mxu0 0.0
    %1259 = vmatpush1.msra.mxu0 %v1234
    %1260 = vmatprep.subr.mxu0 0.0
    %1261 = vmatpush1.msra.mxu0 %v1235
    %1262 = vmatprep.subr.mxu0 0.0
    %1263 = vmatpush1.msra.mxu0 %v1236
    %1264 = vmatprep.subr.mxu0 0.0
    %1265 = vmatpush1.msra.mxu0 %v1237
    %1266 = vmatprep.subr.mxu0 0.0
    %1267 = vmatpush1.msra.mxu0 %v1238
    %1268 = vmatprep.subr.mxu0 0.0
    %1269 = vmatpush1.msra.mxu0 %v1239
    %1270 = vmatprep.subr.mxu0 0.0
    %1271 = vmatpush1.msra.mxu0 %v1240
    %1272 = vmatprep.subr.mxu0 0.0
    %1273 = vmatpush1.msra.mxu0 %v1241
    %1274 = vmatprep.subr.mxu0 0.0
    %1275 = vmatpush1.msra.mxu0 %v1242
    %1276 = vmatprep.subr.mxu0 0.0
    %1277 = vmatpush1.msra.mxu0 %v1243
    %1278 = vmatprep.subr.mxu0 0.0
    %1279 = vmatpush1.msra.mxu0 %v1244
    %1280 = vmatprep.subr.mxu0 0.0
    %1281 = vmatpush1.msra.mxu0 %v1245
    %1282 = vmatprep.subr.mxu0 0.0
    %1283 = vmatpush1.msra.mxu0 %v1246
    %1284 = vmatprep.subr.mxu0 0.0
    %1285 = vmatpush1.msra.mxu0 %v1247
    %1286 = vmatprep.subr.mxu0 0.0
    %1287 = vmatpush1.msra.mxu0 %v1248
    %1288 = vmatprep.subr.mxu0 0.0
    %1289 = vmatpush1.msra.mxu0 0.0
    %1290 = vmatprep.subr.mxu0 0.0
    %1291 = vmatpush1.msra.mxu0 0.0
    %1292 = vmatprep.subr.mxu0 0.0
    %1293 = vmatpush1.msra.mxu0 0.0
    %1294 = vmatprep.subr.mxu0 0.0
    %1295 = vmatpush1.msra.mxu0 0.0
    %1296 = vmatprep.subr.mxu0 0.0
    %1297 = vmatpush1.msra.mxu0 0.0
    %1298 = vmatprep.subr.mxu0 0.0
    %1299 = vmatpush1.msra.mxu0 0.0
    %1300 = vmatprep.subr.mxu0 0.0
    %1301 = vmatpush1.msra.mxu0 0.0
    %1302 = vmatprep.subr.mxu0 0.0
    %1303 = vmatpush1.msra.mxu0 0.0
    %1304 = vmatprep.subr.mxu0 0.0
    %1305 = vmatpush1.msra.mxu0 0.0
    %1306 = vmatprep.subr.mxu0 0.0
    %1307 = vmatpush1.msra.mxu0 0.0
    %1308 = vmatprep.subr.mxu0 0.0
    %1309 = vmatpush1.msra.mxu0 0.0
    %1310 = vmatprep.subr.mxu0 0.0
    %1311 = vmatpush1.msra.mxu0 0.0
    %1312 = vmatprep.subr.mxu0 0.0
    %1313 = vmatpush1.msra.mxu0 0.0
    %1314 = vmatprep.subr.mxu0 0.0
    %1315 = vmatpush1.msra.mxu0 0.0
    %1316 = vmatprep.subr.mxu0 0.0
    %1317 = vmatpush1.msra.mxu0 0.0
    %1318 = vmatprep.subr.mxu0 0.0
    %1319 = vmatpush1.msra.mxu0 0.0
    %1320 = vmatprep.mubr.f32.mxu0 0.0
    %1321 = vmatmul.mubr.f32.gmra.mrb[0].mxu0 %v1232
    %v1322 = vpop.f32.mrb[0].mxu0
    %v1323 = vadd.f32 %v1254, %v1322
    %v1324 = vpop.f32.mrb[0].mxu0
    %1325 = vdwg.mxu0
    %v1326 = vadd.f32 %v1147, %v1323
    %v1327 = vld [vmem:[%s14] sm:$0x1]
    %v1328 = vld [vmem:[%s15] sm:$0x1]
    %v1329 = vsel %vm1119, %v1326, 0.0
    %1330 = vadd.xlane.f32.xlu0 %v1329
    %v1331 = vpop.xlane.xlu0 %1330
    %v1332 = vmul.f32 %v1331, %v1123
    %v1333 = vsub.f32 %v1326, %v1332
    %v1334 = vmul.f32 %v1333, %v1333
    %v1335 = vsel %vm1119, %v1334, 0.0
    %1336 = vadd.xlane.f32.xlu0 %v1335
    %v1337 = vpop.xlane.xlu0 %1336
    %v1338 = vmul.f32 %v1337, %v1123
    %v1339 = vadd.f32 %v1338, 1e-05
    %v1340 = vrsqrt.pop %v1339
    %v1341 = vmul.f32 %v1333, %v1340
    %v1343 = vlaneseq
    %v1344 = vshrl.u32 %v1343, 7
    %v1345 = vsub.s32 0, %v1344
    %v1346 = vrot.slane %v1327, %v1345
    %v1348 = vmul.f32 %v1341, %v1346
    %v1350 = vlaneseq
    %v1351 = vshrl.u32 %v1350, 7
    %v1352 = vsub.s32 0, %v1351
    %v1353 = vrot.slane %v1328, %v1352
    %v1355 = vadd.f32 %v1348, %v1353
    %1356 = vst.msk [vmem:[#allocation2] sm:$0x3] %vm1119, %v1355
    // Predicated region
    $region66: #{tpu_custom_call.1} parent=1 // pred_check
      _
    $region67: #{tpu_custom_call.1} parent=1 // pred_check_branch
      %1358 = sbr.rel (0) target = $region69
    $region68: #{tpu_custom_call.1} parent=1 // pred_region
      %s1360 = ssub.s32 32, 32
      %1361 = vsyncadd [#allocation3], %s1360
      %s1363 = sshll.u32 [#allocation2], 4
      %s1364 = int_to_ptr.vmem [resolvable:$true] %s1363
      %1366 = dma.vmem_to_hbm [thread:$0]  %s1364, 32, %s16, [#allocation3]
    $region69: #{tpu_custom_call.1} parent=1 // pred_fallthru
      _
    // Predicated region
    $region70: #{tpu_custom_call.1} parent=1 // pred_check
      _
    $region71: #{tpu_custom_call.1} parent=1 // pred_check_branch
      %1368 = sbr.rel (0) target = $region73
    $region72: #{tpu_custom_call.1} parent=1 // pred_region
      %1369 = dma.done [#allocation3], 32
    $region73: #{tpu_custom_call.1} parent=1 // pred_fallthru
      _
    %1370 = vsyncpa [#allocation3], 1

</llo_original>
